<compile_context>
chip_gen: v7x
topology: tpu7x:2x2x1
jax: 0.10.0
libtpu: 0.0.40
codegen_flags: <defaults>
</compile_context>

<pallas_src>
import functools
import math

import jax
import jax.numpy as jnp
from jax.experimental import pallas as pl
from jax.experimental.pallas import tpu as pltpu

EMB_DIM = 128


def _normalize_w_kernel(w_ref, wn_ref, *, scale):
    """Column-normalize one (D, TC) tile of W, fold in s, cast to bf16."""
    w = w_ref[...]                                                     # (D, TC) f32
    inv = jax.lax.rsqrt(jnp.maximum(jnp.sum(w * w, axis=0, keepdims=True), 1e-24))
    wn_ref[...] = (w * (inv * scale)).astype(wn_ref.dtype)             # s * W/||W||


def _arcface_kernel(emb_ref, wn_ref, labels_ref, bias_ref, loss_ref,
                    m_scr, l_scr, t_scr, *,
                    s, cos_m, sin_m, tile_c, apply_pad_mask, exp_dtype):
    c = pl.program_id(1)
    nc = pl.num_programs(1)

    @pl.when(c == 0)
    def _init():
        m_scr[...] = jnp.full(m_scr.shape, -jnp.inf, dtype=jnp.float32)
        l_scr[...] = jnp.zeros_like(l_scr)
        t_scr[...] = jnp.zeros_like(t_scr)

    # s is pre-folded into Wn, so this is already s*cos(theta): bf16 MXU, f32 acc.
    logits_s = jnp.dot(emb_ref[...], wn_ref[...],
                       preferred_element_type=jnp.float32)             # (TB, TC)

    labels = labels_ref[...]                                           # (TB, 1) int32
    local_lbl = labels - c * tile_c                                    # col within tile
    col_ids = jax.lax.broadcasted_iota(jnp.int32, logits_s.shape, 1)
    one_hot = col_ids == local_lbl                                     # (TB, TC) bool

    # Per-row margin path on a (TB, 1) vector only.  s is an exact power of two,
    # so dividing the scaled logit back recovers the cosine exactly.
    x_true = jnp.sum(jnp.where(one_hot, logits_s, 0.0), axis=1, keepdims=True) * (1.0 / s)
    x_true = jnp.clip(x_true, -1.0 + 1e-07, 1.0 - 1e-07)
    # cos(acos(x) + m) = x*cos(m) - sqrt(1 - x^2)*sin(m)   (theta in [0, pi])
    sin_theta = jnp.sqrt(jnp.maximum(1.0 - x_true * x_true, 0.0))
    target_s = (x_true * cos_m - sin_theta * sin_m) * s                # (TB, 1), scaled

    if apply_pad_mask:
        # Only compiled when C was padded: (1, TC) bias is 0 on real classes and
        # -1e30 on pad columns (one broadcast add, no per-step iota/compare/select).
        logits_s = logits_s + bias_ref[...]

    # Single blend (vselect) for the whole tile; no full-tile scale needed.
    out_tile = jnp.where(one_hot, target_s, logits_s)                  # (TB, TC)

    # Accumulate the scaled true-class logit (CE numerator); exactly one class
    # tile per row contributes.
    in_tile = jnp.logical_and(local_lbl >= 0, local_lbl < tile_c)      # (TB, 1)
    t_scr[...] = t_scr[...] + jnp.where(in_tile, target_s, 0.0)

    # Online (streaming) logsumexp across class tiles.
    tile_max = jnp.max(out_tile, axis=1, keepdims=True)
    m_new = jnp.maximum(m_scr[...], tile_max)
    alpha = jnp.exp(m_scr[...] - m_new)
    p = jnp.exp((out_tile - m_new).astype(exp_dtype))                  # EUP
    if exp_dtype != jnp.float32:
        p = p.astype(jnp.float32)                                      # f32 accumulation
    l_scr[...] = alpha * l_scr[...] + jnp.sum(p, axis=1, keepdims=True)
    m_scr[...] = m_new

    @pl.when(c == nc - 1)
    def _finalize():
        # per-row loss = logsumexp(out_logits) - out_logits[label]
        loss_ref[...] = m_scr[...] + jnp.log(l_scr[...]) - t_scr[...]


def _pad_axis(x, target, axis):
    pad = target - x.shape[axis]
    if pad == 0:
        return x
    widths = [(0, 0)] * x.ndim
    widths[axis] = (0, pad)
    return jnp.pad(x, widths)


def _kernel1_tile(c_pad, max_tile=4096):
    """Largest multiple of 128 that divides c_pad and is <= max_tile."""
    t = min(max_tile, c_pad)
    t -= t % 128
    while t > 128 and c_pad % t != 0:
        t -= 128
    return max(t, 128)


def arcface_loss(emb, W, labels, *, s=64.0, m=0.5, tile_b=512, tile_c=512,
                 exp_dtype=jnp.float32):
    """emb: (B, EMB_DIM) f32, W: (EMB_DIM, C) f32, labels: (B,) int -> scalar f32.

    exp_dtype=jnp.bfloat16 is an opt-in for v6e/v7x (bf16 EUP); keep f32 on v5e.
    """
    B, D = emb.shape
    D2, C = W.shape
    assert D == D2

    # Adaptive tiling: large batch tiles for Wn reuse / MXU fill, but never pad a
    # small batch up to 512 dead rows (16 keeps bf16 sublane packing legal).
    nb = pl.cdiv(B, tile_b)
    tile_b = 16 * pl.cdiv(pl.cdiv(B, nb), 16)
    b_pad = tile_b * nb

    nc = pl.cdiv(C, tile_c)
    tile_c = 128 * pl.cdiv(pl.cdiv(C, nc), 128)
    c_pad = tile_c * nc

    emb_p = _pad_axis(emb.astype(jnp.float32), b_pad, 0).astype(jnp.bfloat16)
    w_p = _pad_axis(W.astype(jnp.float32), c_pad, 1)
    labels_p = _pad_axis(labels.astype(jnp.int32), b_pad, 0).reshape(b_pad, 1)
    # Padded batch rows get label 0 and finite losses; they are sliced off below.
    # The last class tile always contains at least one real class (pad < tile_c),
    # so the -1e30 pad bias can never dominate the online max.
    apply_pad_mask = (c_pad != C)
    class_bias = jnp.where(jnp.arange(c_pad) < C, 0.0, -1e30)
    class_bias = class_bias.reshape(1, c_pad).astype(jnp.float32)

    # --- Kernel 1: hoisted column normalization of W (once), s folded, bf16 out.
    tile_c1 = _kernel1_tile(c_pad)
    wn = pl.pallas_call(
        functools.partial(_normalize_w_kernel, scale=float(s)),
        out_shape=jax.ShapeDtypeStruct((D, c_pad), jnp.bfloat16),
        grid_spec=pltpu.PrefetchScalarGridSpec(
            num_scalar_prefetch=0,
            grid=(c_pad // tile_c1,),
            in_specs=[pl.BlockSpec((D, tile_c1), lambda c: (0, c))],
            out_specs=pl.BlockSpec((D, tile_c1), lambda c: (0, c)),
        ),
        compiler_params=pltpu.CompilerParams(
            dimension_semantics=("parallel",)),
    )(w_p)

    # --- Kernel 2: tiled scaled-cosine logits + ArcFace margin + streaming CE.
    kernel = functools.partial(
        _arcface_kernel, s=float(s), cos_m=math.cos(m), sin_m=math.sin(m),
        tile_c=tile_c, apply_pad_mask=apply_pad_mask, exp_dtype=exp_dtype)

    row_losses = pl.pallas_call(
        kernel,
        out_shape=jax.ShapeDtypeStruct((b_pad, 1), jnp.float32),
        grid_spec=pltpu.PrefetchScalarGridSpec(
            num_scalar_prefetch=0,
            grid=(nb, nc),                               # class (reduction) axis last
            in_specs=[
                pl.BlockSpec((tile_b, D), lambda b, c: (b, 0)),   # emb tile (bf16)
                pl.BlockSpec((D, tile_c), lambda b, c: (0, c)),   # s*Wn tile (bf16)
                pl.BlockSpec((tile_b, 1), lambda b, c: (b, 0)),   # labels (int32)
                pl.BlockSpec((1, tile_c), lambda b, c: (0, c)),   # pad bias (f32)
            ],
            out_specs=pl.BlockSpec((tile_b, 1), lambda b, c: (b, 0)),
            scratch_shapes=[pltpu.VMEM((tile_b, 1), jnp.float32)] * 3,
        ),
        compiler_params=pltpu.CompilerParams(
            dimension_semantics=("parallel", "arbitrary"),
            vmem_limit_bytes=32 * 1024 * 1024,           # few-MiB working set; safe on v7x
        ),
    )(emb_p, wn, labels_p, class_bias)
    # NOTE: for B >> tile_b and very large C one would flip the grid to
    # (classes outer, batch inner) with (b_pad, 1) scratch so Wn is streamed
    # exactly once; with tile_b=512 and B <= 512 this already holds.

    # F.cross_entropy(..., reduction='mean') over the real batch rows.
    return jnp.sum(row_losses[:B, 0]) / B


def _reference_loss(emb, W, labels, s=64.0, m=0.5, matmul_dtype=jnp.float32):
    """Pure-JAX reference mirroring the PyTorch module (optionally bf16 matmul)."""
    Wn = W * jax.lax.rsqrt(jnp.maximum(jnp.sum(W * W, axis=0, keepdims=True), 1e-24))
    logits = jnp.dot(emb.astype(matmul_dtype), Wn.astype(matmul_dtype),
                     preferred_element_type=jnp.float32)
    theta = jnp.arccos(jnp.clip(logits, -1 + 1e-07, 1 - 1e-07))
    target = jnp.cos(theta + m)
    C = W.shape[1]
    one_hot = (labels[:, None] == jnp.arange(C)[None, :]).astype(jnp.float32)
    out = (logits * (1.0 - one_hot) + target * one_hot) * s
    row_max = jnp.max(out, axis=1, keepdims=True)
    lse = row_max[:, 0] + jnp.log(jnp.sum(jnp.exp(out - row_max), axis=1))
    return jnp.mean(lse - jnp.sum(out * one_hot, axis=1))


if __name__ == "__main__":
    B = 8
    NUM_CLASSES = 1000   # exercises class-tile padding (1000 -> 1024) and online LSE

    key = jax.random.PRNGKey(0)
    k_emb, k_w, k_lbl = jax.random.split(key, 3)

    # Embeddings (the module does not normalize emb; the backbone would).
    emb = jax.random.normal(k_emb, (B, EMB_DIM), dtype=jnp.float32)

    # Deterministic xavier_uniform-style init for W (emb_dim, num_classes).
    fan_in, fan_out = NUM_CLASSES, EMB_DIM
    bound = math.sqrt(6.0 / (fan_in + fan_out))
    W = jax.random.uniform(k_w, (EMB_DIM, NUM_CLASSES),
                           minval=-bound, maxval=bound, dtype=jnp.float32)

    labels = jax.random.randint(k_lbl, (B,), 0, NUM_CLASSES, dtype=jnp.int32)

    loss_fn = jax.jit(functools.partial(arcface_loss, s=64.0, m=0.5))
    loss = loss_fn(emb, W, labels)
    loss = jax.block_until_ready(loss)

    # Matched-precision reference (bf16 MXU inputs, f32 everywhere else): tight.
    ref_bf16 = _reference_loss(emb, W, labels, s=64.0, m=0.5,
                               matmul_dtype=jnp.bfloat16)
    # Full-f32 reference (exact torch semantics): loose, bounds the bf16 cast error.
    ref_f32 = _reference_loss(emb, W, labels, s=64.0, m=0.5,
                              matmul_dtype=jnp.float32)

    assert jnp.allclose(loss, ref_bf16, rtol=2e-3, atol=2e-3), (loss, ref_bf16)
    assert jnp.allclose(loss, ref_f32, rtol=5e-2, atol=5e-2), (loss, ref_f32)

    print("KERNEL_OK")
</pallas_src>

<mosaic_0001>
module attributes {stable_mosaic.version = 11 : i64} {
  func.func @_normalize_w_kernel(%arg0: i32, %arg1: memref<128x1024xf32, #tpu.memory_space<vmem>>, %arg2: memref<128x1024xbf16, #tpu.memory_space<vmem>>) attributes {dimension_semantics = [#tpu.dimension_semantics<parallel>], iteration_bounds = array<i64: 1>, scalar_prefetch = 0 : i64, scratch_operands = 0 : i64, tpu.core_type = #tpu.core_type<tc>, window_params = [{transform_indices = @transform_0, window_bounds = array<i64: 128, 1024>}, {transform_indices = @transform_1, window_bounds = array<i64: 128, 1024>}]} {
    %c0 = arith.constant 0 : index
    %c0_0 = arith.constant 0 : index
    %0 = vector.load %arg1[%c0, %c0_0] : memref<128x1024xf32, #tpu.memory_space<vmem>>, vector<128x1024xf32>
    %1 = arith.mulf %0, %0 : vector<128x1024xf32>
    %cst = arith.constant dense<0.000000e+00> : vector<1024xf32>
    %2 = vector.multi_reduction <add>, %1, %cst [0] : vector<128x1024xf32> to vector<1024xf32>
    %3 = vector.shape_cast %2 : vector<1024xf32> to vector<1x1024xf32>
    %cst_1 = arith.constant 1.000000e-24 : f32
    %4 = vector.broadcast %cst_1 : f32 to vector<1x1024xf32>
    %5 = arith.maximumf %3, %4 : vector<1x1024xf32>
    %6 = math.rsqrt %5 : vector<1x1024xf32>
    %cst_2 = arith.constant 6.400000e+01 : f32
    %7 = vector.broadcast %cst_2 : f32 to vector<1x1024xf32>
    %8 = arith.mulf %6, %7 : vector<1x1024xf32>
    %9 = vector.broadcast %8 : vector<1x1024xf32> to vector<128x1024xf32>
    %10 = arith.mulf %0, %9 : vector<128x1024xf32>
    %11 = arith.truncf %10 : vector<128x1024xf32> to vector<128x1024xbf16>
    %c0_3 = arith.constant 0 : index
    %c0_4 = arith.constant 0 : index
    %12 = vector.load %arg2[%c0_3, %c0_4] : memref<128x1024xbf16, #tpu.memory_space<vmem>>, vector<128x1024xbf16>
    tpu.vector_store %arg2[%c0_3, %c0_4], %11 {strides = array<i32>} : memref<128x1024xbf16, #tpu.memory_space<vmem>>, vector<128x1024xbf16>,
    return
  }
  func.func @transform_0(%arg0: i32) -> (i32, i32) {
    %c0_i32 = arith.constant 0 : i32
    %c0_i32_0 = arith.constant 0 : i32
    return %c0_i32, %arg0 : i32, i32
  }
  func.func @transform_1(%arg0: i32) -> (i32, i32) {
    %c0_i32 = arith.constant 0 : i32
    %c0_i32_0 = arith.constant 0 : i32
    return %c0_i32, %arg0 : i32, i32
  }
}

module attributes {stable_mosaic.version = 11 : i64} {
  func.func @_arcface_kernel(%arg0: i32, %arg1: i32, %arg2: memref<16x128xbf16, #tpu.memory_space<vmem>>, %arg3: memref<128x512xbf16, #tpu.memory_space<vmem>>, %arg4: memref<16x1xi32, #tpu.memory_space<vmem>>, %arg5: memref<1x512xf32, #tpu.memory_space<vmem>>, %arg6: memref<16x1xf32, #tpu.memory_space<vmem>>, %arg7: memref<16x1xf32, #tpu.memory_space<vmem>>, %arg8: memref<16x1xf32, #tpu.memory_space<vmem>>, %arg9: memref<16x1xf32, #tpu.memory_space<vmem>>) attributes {dimension_semantics = [#tpu.dimension_semantics<parallel>, #tpu.dimension_semantics<arbitrary>], iteration_bounds = array<i64: 1, 2>, scalar_prefetch = 0 : i64, scratch_operands = 3 : i64, tpu.core_type = #tpu.core_type<tc>, window_params = [{transform_indices = @transform_0, window_bounds = array<i64: 16, 128>}, {transform_indices = @transform_1, window_bounds = array<i64: 128, 512>}, {transform_indices = @transform_2, window_bounds = array<i64: 16, 1>}, {transform_indices = @transform_3, window_bounds = array<i64: 1, 512>}, {transform_indices = @transform_4, window_bounds = array<i64: 16, 1>}]} {
    %c0_i32 = arith.constant 0 : i32
    %0 = arith.cmpi eq, %arg1, %c0_i32 : i32
    %1 = arith.extui %0 : i1 to i32
    %c0_i32_0 = arith.constant 0 : i32
    %2 = arith.cmpi ne, %1, %c0_i32_0 : i32
    scf.if %2 {
      %cst_38 = arith.constant 0xFF800000 : f32
      %72 = vector.broadcast %cst_38 : f32 to vector<16x1xf32>
      %c0_39 = arith.constant 0 : index
      %c0_40 = arith.constant 0 : index
      %73 = vector.load %arg7[%c0_39, %c0_40] : memref<16x1xf32, #tpu.memory_space<vmem>>, vector<16x1xf32>
      tpu.vector_store %arg7[%c0_39, %c0_40], %72 {strides = array<i32>} : memref<16x1xf32, #tpu.memory_space<vmem>>, vector<16x1xf32>,
      %cst_41 = arith.constant 0.000000e+00 : f32
      %74 = vector.broadcast %cst_41 : f32 to vector<16x1xf32>
      %c0_42 = arith.constant 0 : index
      %c0_43 = arith.constant 0 : index
      %75 = vector.load %arg8[%c0_42, %c0_43] : memref<16x1xf32, #tpu.memory_space<vmem>>, vector<16x1xf32>
      tpu.vector_store %arg8[%c0_42, %c0_43], %74 {strides = array<i32>} : memref<16x1xf32, #tpu.memory_space<vmem>>, vector<16x1xf32>,
      %cst_44 = arith.constant 0.000000e+00 : f32
      %76 = vector.broadcast %cst_44 : f32 to vector<16x1xf32>
      %c0_45 = arith.constant 0 : index
      %c0_46 = arith.constant 0 : index
      %77 = vector.load %arg9[%c0_45, %c0_46] : memref<16x1xf32, #tpu.memory_space<vmem>>, vector<16x1xf32>
      tpu.vector_store %arg9[%c0_45, %c0_46], %76 {strides = array<i32>} : memref<16x1xf32, #tpu.memory_space<vmem>>, vector<16x1xf32>,
    } else {
    }
    %c0 = arith.constant 0 : index
    %c0_1 = arith.constant 0 : index
    %3 = vector.load %arg2[%c0, %c0_1] : memref<16x128xbf16, #tpu.memory_space<vmem>>, vector<16x128xbf16>
    %c0_2 = arith.constant 0 : index
    %c0_3 = arith.constant 0 : index
    %4 = vector.load %arg3[%c0_2, %c0_3] : memref<128x512xbf16, #tpu.memory_space<vmem>>, vector<128x512xbf16>
    %cst = arith.constant dense<0.000000e+00> : vector<16x512xf32>
    %5 = tpu.matmul %3, %4, %cst {dimension_numbers = #tpu.dot_dimension_numbers<[1], [0], [0], [1], [0, 0, 1, 1], [], []>} : vector<16x128xbf16>, vector<128x512xbf16>, vector<16x512xf32> -> vector<16x512xf32>
    %c0_4 = arith.constant 0 : index
    %c0_5 = arith.constant 0 : index
    %6 = vector.load %arg4[%c0_4, %c0_5] : memref<16x1xi32, #tpu.memory_space<vmem>>, vector<16x1xi32>
    %c512_i32 = arith.constant 512 : i32
    %7 = arith.muli %arg1, %c512_i32 : i32
    %8 = vector.broadcast %7 : i32 to vector<16x1xi32>
    %9 = arith.subi %6, %8 : vector<16x1xi32>
    %10 = tpu.iota {dimensions = array<i32: 1>} : vector<16x512xi32>
    %11 = vector.broadcast %9 : vector<16x1xi32> to vector<16x512xi32>
    %12 = arith.cmpi eq, %10, %11 : vector<16x512xi32>
    %cst_6 = arith.constant 0.000000e+00 : f32
    %13 = vector.broadcast %cst_6 : f32 to vector<16x512xf32>
    %14 = arith.select %12, %5, %13 : vector<16x512xi1>, vector<16x512xf32>
    %cst_7 = arith.constant dense<0.000000e+00> : vector<16xf32>
    %15 = vector.multi_reduction <add>, %14, %cst_7 [1] : vector<16x512xf32> to vector<16xf32>
    %16 = vector.shape_cast %15 : vector<16xf32> to vector<16x1xf32>
    %cst_8 = arith.constant 1.562500e-02 : f32
    %17 = vector.broadcast %cst_8 : f32 to vector<16x1xf32>
    %18 = arith.mulf %16, %17 : vector<16x1xf32>
    %cst_9 = arith.constant -0.99999988 : f32
    %cst_10 = arith.constant 0.99999988 : f32
    %19 = vector.broadcast %cst_9 : f32 to vector<16x1xf32>
    %20 = arith.maximumf %19, %18 : vector<16x1xf32>
    %21 = vector.broadcast %cst_10 : f32 to vector<16x1xf32>
    %22 = arith.minimumf %21, %20 : vector<16x1xf32>
    %23 = arith.mulf %22, %22 : vector<16x1xf32>
    %cst_11 = arith.constant 1.000000e+00 : f32
    %24 = vector.broadcast %cst_11 : f32 to vector<16x1xf32>
    %25 = arith.subf %24, %23 : vector<16x1xf32>
    %cst_12 = arith.constant 0.000000e+00 : f32
    %26 = vector.broadcast %cst_12 : f32 to vector<16x1xf32>
    %27 = arith.maximumf %25, %26 : vector<16x1xf32>
    %28 = math.sqrt %27 : vector<16x1xf32>
    %cst_13 = arith.constant 0.87758255 : f32
    %29 = vector.broadcast %cst_13 : f32 to vector<16x1xf32>
    %30 = arith.mulf %22, %29 : vector<16x1xf32>
    %cst_14 = arith.constant 0.47942555 : f32
    %31 = vector.broadcast %cst_14 : f32 to vector<16x1xf32>
    %32 = arith.mulf %28, %31 : vector<16x1xf32>
    %33 = arith.subf %30, %32 : vector<16x1xf32>
    %cst_15 = arith.constant 6.400000e+01 : f32
    %34 = vector.broadcast %cst_15 : f32 to vector<16x1xf32>
    %35 = arith.mulf %33, %34 : vector<16x1xf32>
    %c0_16 = arith.constant 0 : index
    %c0_17 = arith.constant 0 : index
    %36 = vector.load %arg5[%c0_16, %c0_17] : memref<1x512xf32, #tpu.memory_space<vmem>>, vector<1x512xf32>
    %37 = vector.broadcast %36 : vector<1x512xf32> to vector<16x512xf32>
    %38 = arith.addf %5, %37 : vector<16x512xf32>
    %39 = vector.shape_cast %35 : vector<16x1xf32> to vector<16x1xf32>
    %40 = vector.broadcast %39 : vector<16x1xf32> to vector<16x512xf32>
    %41 = arith.select %12, %40, %38 : vector<16x512xi1>, vector<16x512xf32>
    %c0_i32_18 = arith.constant 0 : i32
    %42 = vector.broadcast %c0_i32_18 : i32 to vector<16x1xi32>
    %43 = arith.cmpi sge, %9, %42 : vector<16x1xi32>
    %c512_i32_19 = arith.constant 512 : i32
    %44 = vector.broadcast %c512_i32_19 : i32 to vector<16x1xi32>
    %45 = arith.cmpi slt, %9, %44 : vector<16x1xi32>
    %46 = arith.andi %43, %45 : vector<16x1xi1>
    %c0_20 = arith.constant 0 : index
    %c0_21 = arith.constant 0 : index
    %47 = vector.load %arg9[%c0_20, %c0_21] : memref<16x1xf32, #tpu.memory_space<vmem>>, vector<16x1xf32>
    %cst_22 = arith.constant 0.000000e+00 : f32
    %48 = vector.broadcast %cst_22 : f32 to vector<16x1xf32>
    %49 = arith.select %46, %35, %48 : vector<16x1xi1>, vector<16x1xf32>
    %50 = arith.addf %47, %49 : vector<16x1xf32>
    %c0_23 = arith.constant 0 : index
    %c0_24 = arith.constant 0 : index
    %51 = vector.load %arg9[%c0_23, %c0_24] : memref<16x1xf32, #tpu.memory_space<vmem>>, vector<16x1xf32>
    tpu.vector_store %arg9[%c0_23, %c0_24], %50 {strides = array<i32>} : memref<16x1xf32, #tpu.memory_space<vmem>>, vector<16x1xf32>,
    %cst_25 = arith.constant dense<0xFF800000> : vector<16xf32>
    %52 = vector.multi_reduction <maximumf>, %41, %cst_25 [1] : vector<16x512xf32> to vector<16xf32>
    %53 = vector.shape_cast %52 : vector<16xf32> to vector<16x1xf32>
    %c0_26 = arith.constant 0 : index
    %c0_27 = arith.constant 0 : index
    %54 = vector.load %arg7[%c0_26, %c0_27] : memref<16x1xf32, #tpu.memory_space<vmem>>, vector<16x1xf32>
    %55 = arith.maximumf %54, %53 : vector<16x1xf32>
    %c0_28 = arith.constant 0 : index
    %c0_29 = arith.constant 0 : index
    %56 = vector.load %arg7[%c0_28, %c0_29] : memref<16x1xf32, #tpu.memory_space<vmem>>, vector<16x1xf32>
    %57 = arith.subf %56, %55 : vector<16x1xf32>
    %58 = math.exp %57 : vector<16x1xf32>
    %59 = vector.broadcast %55 : vector<16x1xf32> to vector<16x512xf32>
    %60 = arith.subf %41, %59 : vector<16x512xf32>
    %61 = math.exp %60 : vector<16x512xf32>
    %c0_30 = arith.constant 0 : index
    %c0_31 = arith.constant 0 : index
    %62 = vector.load %arg8[%c0_30, %c0_31] : memref<16x1xf32, #tpu.memory_space<vmem>>, vector<16x1xf32>
    %63 = arith.mulf %58, %62 : vector<16x1xf32>
    %cst_32 = arith.constant dense<0.000000e+00> : vector<16xf32>
    %64 = vector.multi_reduction <add>, %61, %cst_32 [1] : vector<16x512xf32> to vector<16xf32>
    %65 = vector.shape_cast %64 : vector<16xf32> to vector<16x1xf32>
    %66 = arith.addf %63, %65 : vector<16x1xf32>
    %c0_33 = arith.constant 0 : index
    %c0_34 = arith.constant 0 : index
    %67 = vector.load %arg8[%c0_33, %c0_34] : memref<16x1xf32, #tpu.memory_space<vmem>>, vector<16x1xf32>
    tpu.vector_store %arg8[%c0_33, %c0_34], %66 {strides = array<i32>} : memref<16x1xf32, #tpu.memory_space<vmem>>, vector<16x1xf32>,
    %c0_35 = arith.constant 0 : index
    %c0_36 = arith.constant 0 : index
    %68 = vector.load %arg7[%c0_35, %c0_36] : memref<16x1xf32, #tpu.memory_space<vmem>>, vector<16x1xf32>
    tpu.vector_store %arg7[%c0_35, %c0_36], %55 {strides = array<i32>} : memref<16x1xf32, #tpu.memory_space<vmem>>, vector<16x1xf32>,
    %c1_i32 = arith.constant 1 : i32
    %69 = arith.cmpi eq, %arg1, %c1_i32 : i32
    %70 = arith.extui %69 : i1 to i32
    %c0_i32_37 = arith.constant 0 : i32
    %71 = arith.cmpi ne, %70, %c0_i32_37 : i32
    scf.if %71 {
      %c0_38 = arith.constant 0 : index
      %c0_39 = arith.constant 0 : index
      %72 = vector.load %arg7[%c0_38, %c0_39] : memref<16x1xf32, #tpu.memory_space<vmem>>, vector<16x1xf32>
      %c0_40 = arith.constant 0 : index
      %c0_41 = arith.constant 0 : index
      %73 = vector.load %arg8[%c0_40, %c0_41] : memref<16x1xf32, #tpu.memory_space<vmem>>, vector<16x1xf32>
      %74 = math.log %73 : vector<16x1xf32>
      %75 = arith.addf %72, %74 : vector<16x1xf32>
      %c0_42 = arith.constant 0 : index
      %c0_43 = arith.constant 0 : index
      %76 = vector.load %arg9[%c0_42, %c0_43] : memref<16x1xf32, #tpu.memory_space<vmem>>, vector<16x1xf32>
      %77 = arith.subf %75, %76 : vector<16x1xf32>
      %c0_44 = arith.constant 0 : index
      %c0_45 = arith.constant 0 : index
      %78 = vector.load %arg6[%c0_44, %c0_45] : memref<16x1xf32, #tpu.memory_space<vmem>>, vector<16x1xf32>
      tpu.vector_store %arg6[%c0_44, %c0_45], %77 {strides = array<i32>} : memref<16x1xf32, #tpu.memory_space<vmem>>, vector<16x1xf32>,
    } else {
    }
    return
  }
  func.func @transform_0(%arg0: i32, %arg1: i32) -> (i32, i32) {
    %c0_i32 = arith.constant 0 : i32
    %c0_i32_0 = arith.constant 0 : i32
    return %arg0, %c0_i32 : i32, i32
  }
  func.func @transform_1(%arg0: i32, %arg1: i32) -> (i32, i32) {
    %c0_i32 = arith.constant 0 : i32
    %c0_i32_0 = arith.constant 0 : i32
    return %c0_i32, %arg1 : i32, i32
  }
  func.func @transform_2(%arg0: i32, %arg1: i32) -> (i32, i32) {
    %c0_i32 = arith.constant 0 : i32
    %c0_i32_0 = arith.constant 0 : i32
    return %arg0, %c0_i32 : i32, i32
  }
  func.func @transform_3(%arg0: i32, %arg1: i32) -> (i32, i32) {
    %c0_i32 = arith.constant 0 : i32
    %c0_i32_0 = arith.constant 0 : i32
    return %c0_i32, %arg1 : i32, i32
  }
  func.func @transform_4(%arg0: i32, %arg1: i32) -> (i32, i32) {
    %c0_i32 = arith.constant 0 : i32
    %c0_i32_0 = arith.constant 0 : i32
    return %arg0, %c0_i32 : i32, i32
  }
}

</mosaic_0001>

<llo_original>
// kernel: arcface_loss.2
$region0: #{arcface_loss.2}
  #allocation0 [shape = 'u32[]', space=smem, size = 0x4, offset = 0x4, fixed_abs, tag = 'smem constant byte address 0x4 - core index']
  #allocation1 [shape = 'u32[144,128]{1,0:T(1,128)}', space=vmem, size = 0x12000, scoped, tag = 'internal scratch']
  %s0 = inlined_call_operand.vmem [shape: f32[128,1024], index: 0, kind: input, shape index: {}]
  %s1 = inlined_call_operand.vmem [shape: bf16[128,1024], index: 1, kind: output, shape index: {}]
  %s2 = sld [smem:[#allocation0]]
  $region14: #{arcface_loss.2} parent=0
    _
  %s4 = ssub.s32 1, %s2
  %s5 = scalar_select 0, %s4, %s2
  // Predicated region
  $region2: #{arcface_loss.2} parent=0 // pred_check
    _
  $region3: #{arcface_loss.2} parent=0 // pred_check_branch
    %7 = sbr.rel (0) target = $region5
  $region4: #{arcface_loss.2} parent=0 // pred_region
    _
  $region5: #{arcface_loss.2} parent=0 // pred_fallthru
    _
  %v8 = vld [vmem:[%s0] sm:$0xff]
  %v9 = vld [vmem:[%s0 + $0x8] sm:$0xff]
  %v10 = vld [vmem:[%s0 + $0x10] sm:$0xff]
  %v11 = vld [vmem:[%s0 + $0x18] sm:$0xff]
  %v12 = vld [vmem:[%s0 + $0x20] sm:$0xff]
  %v13 = vld [vmem:[%s0 + $0x28] sm:$0xff]
  %v14 = vld [vmem:[%s0 + $0x30] sm:$0xff]
  %v15 = vld [vmem:[%s0 + $0x38] sm:$0xff]
  %v16 = vld [vmem:[%s0 + $0x40] sm:$0xff]
  %v17 = vld [vmem:[%s0 + $0x48] sm:$0xff]
  %v18 = vld [vmem:[%s0 + $0x50] sm:$0xff]
  %v19 = vld [vmem:[%s0 + $0x58] sm:$0xff]
  %v20 = vld [vmem:[%s0 + $0x60] sm:$0xff]
  %v21 = vld [vmem:[%s0 + $0x68] sm:$0xff]
  %v22 = vld [vmem:[%s0 + $0x70] sm:$0xff]
  %v23 = vld [vmem:[%s0 + $0x78] sm:$0xff]
  %v24 = vld [vmem:[%s0 + $0x80] sm:$0xff]
  %v25 = vld [vmem:[%s0 + $0x88] sm:$0xff]
  %v26 = vld [vmem:[%s0 + $0x90] sm:$0xff]
  %v27 = vld [vmem:[%s0 + $0x98] sm:$0xff]
  %v28 = vld [vmem:[%s0 + $0xa0] sm:$0xff]
  %v29 = vld [vmem:[%s0 + $0xa8] sm:$0xff]
  %v30 = vld [vmem:[%s0 + $0xb0] sm:$0xff]
  %v31 = vld [vmem:[%s0 + $0xb8] sm:$0xff]
  %v32 = vld [vmem:[%s0 + $0xc0] sm:$0xff]
  %v33 = vld [vmem:[%s0 + $0xc8] sm:$0xff]
  %v34 = vld [vmem:[%s0 + $0xd0] sm:$0xff]
  %v35 = vld [vmem:[%s0 + $0xd8] sm:$0xff]
  %v36 = vld [vmem:[%s0 + $0xe0] sm:$0xff]
  %v37 = vld [vmem:[%s0 + $0xe8] sm:$0xff]
  %v38 = vld [vmem:[%s0 + $0xf0] sm:$0xff]
  %v39 = vld [vmem:[%s0 + $0xf8] sm:$0xff]
  %v40 = vld [vmem:[%s0 + $0x100] sm:$0xff]
  %v41 = vld [vmem:[%s0 + $0x108] sm:$0xff]
  %v42 = vld [vmem:[%s0 + $0x110] sm:$0xff]
  %v43 = vld [vmem:[%s0 + $0x118] sm:$0xff]
  %v44 = vld [vmem:[%s0 + $0x120] sm:$0xff]
  %v45 = vld [vmem:[%s0 + $0x128] sm:$0xff]
  %v46 = vld [vmem:[%s0 + $0x130] sm:$0xff]
  %v47 = vld [vmem:[%s0 + $0x138] sm:$0xff]
  %v48 = vld [vmem:[%s0 + $0x140] sm:$0xff]
  %v49 = vld [vmem:[%s0 + $0x148] sm:$0xff]
  %v50 = vld [vmem:[%s0 + $0x150] sm:$0xff]
  %v51 = vld [vmem:[%s0 + $0x158] sm:$0xff]
  %v52 = vld [vmem:[%s0 + $0x160] sm:$0xff]
  %v53 = vld [vmem:[%s0 + $0x168] sm:$0xff]
  %v54 = vld [vmem:[%s0 + $0x170] sm:$0xff]
  %v55 = vld [vmem:[%s0 + $0x178] sm:$0xff]
  %v56 = vld [vmem:[%s0 + $0x180] sm:$0xff]
  %v57 = vld [vmem:[%s0 + $0x188] sm:$0xff]
  %v58 = vld [vmem:[%s0 + $0x190] sm:$0xff]
  %v59 = vld [vmem:[%s0 + $0x198] sm:$0xff]
  %v60 = vld [vmem:[%s0 + $0x1a0] sm:$0xff]
  %v61 = vld [vmem:[%s0 + $0x1a8] sm:$0xff]
  %v62 = vld [vmem:[%s0 + $0x1b0] sm:$0xff]
  %v63 = vld [vmem:[%s0 + $0x1b8] sm:$0xff]
  %v64 = vld [vmem:[%s0 + $0x1c0] sm:$0xff]
  %v65 = vld [vmem:[%s0 + $0x1c8] sm:$0xff]
  %v66 = vld [vmem:[%s0 + $0x1d0] sm:$0xff]
  %v67 = vld [vmem:[%s0 + $0x1d8] sm:$0xff]
  %v68 = vld [vmem:[%s0 + $0x1e0] sm:$0xff]
  %v69 = vld [vmem:[%s0 + $0x1e8] sm:$0xff]
  %v70 = vld [vmem:[%s0 + $0x1f0] sm:$0xff]
  %v71 = vld [vmem:[%s0 + $0x1f8] sm:$0xff]
  %v72 = vld [vmem:[%s0 + $0x200] sm:$0xff]
  %v73 = vld [vmem:[%s0 + $0x208] sm:$0xff]
  %v74 = vld [vmem:[%s0 + $0x210] sm:$0xff]
  %v75 = vld [vmem:[%s0 + $0x218] sm:$0xff]
  %v76 = vld [vmem:[%s0 + $0x220] sm:$0xff]
  %v77 = vld [vmem:[%s0 + $0x228] sm:$0xff]
  %v78 = vld [vmem:[%s0 + $0x230] sm:$0xff]
  %v79 = vld [vmem:[%s0 + $0x238] sm:$0xff]
  %v80 = vld [vmem:[%s0 + $0x240] sm:$0xff]
  %v81 = vld [vmem:[%s0 + $0x248] sm:$0xff]
  %v82 = vld [vmem:[%s0 + $0x250] sm:$0xff]
  %v83 = vld [vmem:[%s0 + $0x258] sm:$0xff]
  %v84 = vld [vmem:[%s0 + $0x260] sm:$0xff]
  %v85 = vld [vmem:[%s0 + $0x268] sm:$0xff]
  %v86 = vld [vmem:[%s0 + $0x270] sm:$0xff]
  %v87 = vld [vmem:[%s0 + $0x278] sm:$0xff]
  %v88 = vld [vmem:[%s0 + $0x280] sm:$0xff]
  %v89 = vld [vmem:[%s0 + $0x288] sm:$0xff]
  %v90 = vld [vmem:[%s0 + $0x290] sm:$0xff]
  %v91 = vld [vmem:[%s0 + $0x298] sm:$0xff]
  %v92 = vld [vmem:[%s0 + $0x2a0] sm:$0xff]
  %v93 = vld [vmem:[%s0 + $0x2a8] sm:$0xff]
  %v94 = vld [vmem:[%s0 + $0x2b0] sm:$0xff]
  %v95 = vld [vmem:[%s0 + $0x2b8] sm:$0xff]
  %v96 = vld [vmem:[%s0 + $0x2c0] sm:$0xff]
  %v97 = vld [vmem:[%s0 + $0x2c8] sm:$0xff]
  %v98 = vld [vmem:[%s0 + $0x2d0] sm:$0xff]
  %v99 = vld [vmem:[%s0 + $0x2d8] sm:$0xff]
  %v100 = vld [vmem:[%s0 + $0x2e0] sm:$0xff]
  %v101 = vld [vmem:[%s0 + $0x2e8] sm:$0xff]
  %v102 = vld [vmem:[%s0 + $0x2f0] sm:$0xff]
  %v103 = vld [vmem:[%s0 + $0x2f8] sm:$0xff]
  %v104 = vld [vmem:[%s0 + $0x300] sm:$0xff]
  %v105 = vld [vmem:[%s0 + $0x308] sm:$0xff]
  %v106 = vld [vmem:[%s0 + $0x310] sm:$0xff]
  %v107 = vld [vmem:[%s0 + $0x318] sm:$0xff]
  %v108 = vld [vmem:[%s0 + $0x320] sm:$0xff]
  %v109 = vld [vmem:[%s0 + $0x328] sm:$0xff]
  %v110 = vld [vmem:[%s0 + $0x330] sm:$0xff]
  %v111 = vld [vmem:[%s0 + $0x338] sm:$0xff]
  %v112 = vld [vmem:[%s0 + $0x340] sm:$0xff]
  %v113 = vld [vmem:[%s0 + $0x348] sm:$0xff]
  %v114 = vld [vmem:[%s0 + $0x350] sm:$0xff]
  %v115 = vld [vmem:[%s0 + $0x358] sm:$0xff]
  %v116 = vld [vmem:[%s0 + $0x360] sm:$0xff]
  %v117 = vld [vmem:[%s0 + $0x368] sm:$0xff]
  %v118 = vld [vmem:[%s0 + $0x370] sm:$0xff]
  %v119 = vld [vmem:[%s0 + $0x378] sm:$0xff]
  %v120 = vld [vmem:[%s0 + $0x380] sm:$0xff]
  %v121 = vld [vmem:[%s0 + $0x388] sm:$0xff]
  %v122 = vld [vmem:[%s0 + $0x390] sm:$0xff]
  %v123 = vld [vmem:[%s0 + $0x398] sm:$0xff]
  %v124 = vld [vmem:[%s0 + $0x3a0] sm:$0xff]
  %v125 = vld [vmem:[%s0 + $0x3a8] sm:$0xff]
  %v126 = vld [vmem:[%s0 + $0x3b0] sm:$0xff]
  %v127 = vld [vmem:[%s0 + $0x3b8] sm:$0xff]
  %v128 = vld [vmem:[%s0 + $0x3c0] sm:$0xff]
  %v129 = vld [vmem:[%s0 + $0x3c8] sm:$0xff]
  %v130 = vld [vmem:[%s0 + $0x3d0] sm:$0xff]
  %v131 = vld [vmem:[%s0 + $0x3d8] sm:$0xff]
  %v132 = vld [vmem:[%s0 + $0x3e0] sm:$0xff]
  %v133 = vld [vmem:[%s0 + $0x3e8] sm:$0xff]
  %v134 = vld [vmem:[%s0 + $0x3f0] sm:$0xff]
  %v135 = vld [vmem:[%s0 + $0x3f8] sm:$0xff]
  %v136 = vmul.f32 %v8, %v8
  %v137 = vmul.f32 %v9, %v9
  %v138 = vmul.f32 %v10, %v10
  %v139 = vmul.f32 %v11, %v11
  %v140 = vmul.f32 %v12, %v12
  %v141 = vmul.f32 %v13, %v13
  %v142 = vmul.f32 %v14, %v14
  %v143 = vmul.f32 %v15, %v15
  %v144 = vmul.f32 %v16, %v16
  %v145 = vmul.f32 %v17, %v17
  %v146 = vmul.f32 %v18, %v18
  %v147 = vmul.f32 %v19, %v19
  %v148 = vmul.f32 %v20, %v20
  %v149 = vmul.f32 %v21, %v21
  %v150 = vmul.f32 %v22, %v22
  %v151 = vmul.f32 %v23, %v23
  %v152 = vmul.f32 %v24, %v24
  %v153 = vmul.f32 %v25, %v25
  %v154 = vmul.f32 %v26, %v26
  %v155 = vmul.f32 %v27, %v27
  %v156 = vmul.f32 %v28, %v28
  %v157 = vmul.f32 %v29, %v29
  %v158 = vmul.f32 %v30, %v30
  %v159 = vmul.f32 %v31, %v31
  %v160 = vmul.f32 %v32, %v32
  %v161 = vmul.f32 %v33, %v33
  %v162 = vmul.f32 %v34, %v34
  %v163 = vmul.f32 %v35, %v35
  %v164 = vmul.f32 %v36, %v36
  %v165 = vmul.f32 %v37, %v37
  %v166 = vmul.f32 %v38, %v38
  %v167 = vmul.f32 %v39, %v39
  %v168 = vmul.f32 %v40, %v40
  %v169 = vmul.f32 %v41, %v41
  %v170 = vmul.f32 %v42, %v42
  %v171 = vmul.f32 %v43, %v43
  %v172 = vmul.f32 %v44, %v44
  %v173 = vmul.f32 %v45, %v45
  %v174 = vmul.f32 %v46, %v46
  %v175 = vmul.f32 %v47, %v47
  %v176 = vmul.f32 %v48, %v48
  %v177 = vmul.f32 %v49, %v49
  %v178 = vmul.f32 %v50, %v50
  %v179 = vmul.f32 %v51, %v51
  %v180 = vmul.f32 %v52, %v52
  %v181 = vmul.f32 %v53, %v53
  %v182 = vmul.f32 %v54, %v54
  %v183 = vmul.f32 %v55, %v55
  %v184 = vmul.f32 %v56, %v56
  %v185 = vmul.f32 %v57, %v57
  %v186 = vmul.f32 %v58, %v58
  %v187 = vmul.f32 %v59, %v59
  %v188 = vmul.f32 %v60, %v60
  %v189 = vmul.f32 %v61, %v61
  %v190 = vmul.f32 %v62, %v62
  %v191 = vmul.f32 %v63, %v63
  %v192 = vmul.f32 %v64, %v64
  %v193 = vmul.f32 %v65, %v65
  %v194 = vmul.f32 %v66, %v66
  %v195 = vmul.f32 %v67, %v67
  %v196 = vmul.f32 %v68, %v68
  %v197 = vmul.f32 %v69, %v69
  %v198 = vmul.f32 %v70, %v70
  %v199 = vmul.f32 %v71, %v71
  %v200 = vmul.f32 %v72, %v72
  %v201 = vmul.f32 %v73, %v73
  %v202 = vmul.f32 %v74, %v74
  %v203 = vmul.f32 %v75, %v75
  %v204 = vmul.f32 %v76, %v76
  %v205 = vmul.f32 %v77, %v77
  %v206 = vmul.f32 %v78, %v78
  %v207 = vmul.f32 %v79, %v79
  %v208 = vmul.f32 %v80, %v80
  %v209 = vmul.f32 %v81, %v81
  %v210 = vmul.f32 %v82, %v82
  %v211 = vmul.f32 %v83, %v83
  %v212 = vmul.f32 %v84, %v84
  %v213 = vmul.f32 %v85, %v85
  %v214 = vmul.f32 %v86, %v86
  %v215 = vmul.f32 %v87, %v87
  %v216 = vmul.f32 %v88, %v88
  %v217 = vmul.f32 %v89, %v89
  %v218 = vmul.f32 %v90, %v90
  %v219 = vmul.f32 %v91, %v91
  %v220 = vmul.f32 %v92, %v92
  %v221 = vmul.f32 %v93, %v93
  %v222 = vmul.f32 %v94, %v94
  %v223 = vmul.f32 %v95, %v95
  %v224 = vmul.f32 %v96, %v96
  %v225 = vmul.f32 %v97, %v97
  %v226 = vmul.f32 %v98, %v98
  %v227 = vmul.f32 %v99, %v99
  %v228 = vmul.f32 %v100, %v100
  %v229 = vmul.f32 %v101, %v101
  %v230 = vmul.f32 %v102, %v102
  %v231 = vmul.f32 %v103, %v103
  %v232 = vmul.f32 %v104, %v104
  %v233 = vmul.f32 %v105, %v105
  %v234 = vmul.f32 %v106, %v106
  %v235 = vmul.f32 %v107, %v107
  %v236 = vmul.f32 %v108, %v108
  %v237 = vmul.f32 %v109, %v109
  %v238 = vmul.f32 %v110, %v110
  %v239 = vmul.f32 %v111, %v111
  %v240 = vmul.f32 %v112, %v112
  %v241 = vmul.f32 %v113, %v113
  %v242 = vmul.f32 %v114, %v114
  %v243 = vmul.f32 %v115, %v115
  %v244 = vmul.f32 %v116, %v116
  %v245 = vmul.f32 %v117, %v117
  %v246 = vmul.f32 %v118, %v118
  %v247 = vmul.f32 %v119, %v119
  %v248 = vmul.f32 %v120, %v120
  %v249 = vmul.f32 %v121, %v121
  %v250 = vmul.f32 %v122, %v122
  %v251 = vmul.f32 %v123, %v123
  %v252 = vmul.f32 %v124, %v124
  %v253 = vmul.f32 %v125, %v125
  %v254 = vmul.f32 %v126, %v126
  %v255 = vmul.f32 %v127, %v127
  %v256 = vmul.f32 %v128, %v128
  %v257 = vmul.f32 %v129, %v129
  %v258 = vmul.f32 %v130, %v130
  %v259 = vmul.f32 %v131, %v131
  %v260 = vmul.f32 %v132, %v132
  %v261 = vmul.f32 %v133, %v133
  %v262 = vmul.f32 %v134, %v134
  %v263 = vmul.f32 %v135, %v135
  %v264 = vadd.f32 %v136, %v144
  %v265 = vadd.f32 %v264, %v152
  %v266 = vadd.f32 %v265, %v160
  %v267 = vadd.f32 %v266, %v168
  %v268 = vadd.f32 %v267, %v176
  %v269 = vadd.f32 %v268, %v184
  %v270 = vadd.f32 %v269, %v192
  %v271 = vadd.f32 %v270, %v200
  %v272 = vadd.f32 %v271, %v208
  %v273 = vadd.f32 %v272, %v216
  %v274 = vadd.f32 %v273, %v224
  %v275 = vadd.f32 %v274, %v232
  %v276 = vadd.f32 %v275, %v240
  %v277 = vadd.f32 %v276, %v248
  %v278 = vadd.f32 %v277, %v256
  %v279 = vrot.slane %v278, 4
  %v280 = vadd.f32 %v278, %v279
  %v281 = vrot.slane %v280, 2
  %v282 = vadd.f32 %v280, %v281
  %v283 = vrot.slane %v282, 1
  %v284 = vadd.f32 %v282, %v283
  %v285 = vadd.f32 %v137, %v145
  %v286 = vadd.f32 %v285, %v153
  %v287 = vadd.f32 %v286, %v161
  %v288 = vadd.f32 %v287, %v169
  %v289 = vadd.f32 %v288, %v177
  %v290 = vadd.f32 %v289, %v185
  %v291 = vadd.f32 %v290, %v193
  %v292 = vadd.f32 %v291, %v201
  %v293 = vadd.f32 %v292, %v209
  %v294 = vadd.f32 %v293, %v217
  %v295 = vadd.f32 %v294, %v225
  %v296 = vadd.f32 %v295, %v233
  %v297 = vadd.f32 %v296, %v241
  %v298 = vadd.f32 %v297, %v249
  %v299 = vadd.f32 %v298, %v257
  %v300 = vrot.slane %v299, 4
  %v301 = vadd.f32 %v299, %v300
  %v302 = vrot.slane %v301, 2
  %v303 = vadd.f32 %v301, %v302
  %v304 = vrot.slane %v303, 1
  %v305 = vadd.f32 %v303, %v304
  %v306 = vadd.f32 %v138, %v146
  %v307 = vadd.f32 %v306, %v154
  %v308 = vadd.f32 %v307, %v162
  %v309 = vadd.f32 %v308, %v170
  %v310 = vadd.f32 %v309, %v178
  %v311 = vadd.f32 %v310, %v186
  %v312 = vadd.f32 %v311, %v194
  %v313 = vadd.f32 %v312, %v202
  %v314 = vadd.f32 %v313, %v210
  %v315 = vadd.f32 %v314, %v218
  %v316 = vadd.f32 %v315, %v226
  %v317 = vadd.f32 %v316, %v234
  %v318 = vadd.f32 %v317, %v242
  %v319 = vadd.f32 %v318, %v250
  %v320 = vadd.f32 %v319, %v258
  %v321 = vrot.slane %v320, 4
  %v322 = vadd.f32 %v320, %v321
  %v323 = vrot.slane %v322, 2
  %v324 = vadd.f32 %v322, %v323
  %v325 = vrot.slane %v324, 1
  %v326 = vadd.f32 %v324, %v325
  %v327 = vadd.f32 %v139, %v147
  %v328 = vadd.f32 %v327, %v155
  %v329 = vadd.f32 %v328, %v163
  %v330 = vadd.f32 %v329, %v171
  %v331 = vadd.f32 %v330, %v179
  %v332 = vadd.f32 %v331, %v187
  %v333 = vadd.f32 %v332, %v195
  %v334 = vadd.f32 %v333, %v203
  %v335 = vadd.f32 %v334, %v211
  %v336 = vadd.f32 %v335, %v219
  %v337 = vadd.f32 %v336, %v227
  %v338 = vadd.f32 %v337, %v235
  %v339 = vadd.f32 %v338, %v243
  %v340 = vadd.f32 %v339, %v251
  %v341 = vadd.f32 %v340, %v259
  %v342 = vrot.slane %v341, 4
  %v343 = vadd.f32 %v341, %v342
  %v344 = vrot.slane %v343, 2
  %v345 = vadd.f32 %v343, %v344
  %v346 = vrot.slane %v345, 1
  %v347 = vadd.f32 %v345, %v346
  %v348 = vadd.f32 %v140, %v148
  %v349 = vadd.f32 %v348, %v156
  %v350 = vadd.f32 %v349, %v164
  %v351 = vadd.f32 %v350, %v172
  %v352 = vadd.f32 %v351, %v180
  %v353 = vadd.f32 %v352, %v188
  %v354 = vadd.f32 %v353, %v196
  %v355 = vadd.f32 %v354, %v204
  %v356 = vadd.f32 %v355, %v212
  %v357 = vadd.f32 %v356, %v220
  %v358 = vadd.f32 %v357, %v228
  %v359 = vadd.f32 %v358, %v236
  %v360 = vadd.f32 %v359, %v244
  %v361 = vadd.f32 %v360, %v252
  %v362 = vadd.f32 %v361, %v260
  %v363 = vrot.slane %v362, 4
  %v364 = vadd.f32 %v362, %v363
  %v365 = vrot.slane %v364, 2
  %v366 = vadd.f32 %v364, %v365
  %v367 = vrot.slane %v366, 1
  %v368 = vadd.f32 %v366, %v367
  %v369 = vadd.f32 %v141, %v149
  %v370 = vadd.f32 %v369, %v157
  %v371 = vadd.f32 %v370, %v165
  %v372 = vadd.f32 %v371, %v173
  %v373 = vadd.f32 %v372, %v181
  %v374 = vadd.f32 %v373, %v189
  %v375 = vadd.f32 %v374, %v197
  %v376 = vadd.f32 %v375, %v205
  %v377 = vadd.f32 %v376, %v213
  %v378 = vadd.f32 %v377, %v221
  %v379 = vadd.f32 %v378, %v229
  %v380 = vadd.f32 %v379, %v237
  %v381 = vadd.f32 %v380, %v245
  %v382 = vadd.f32 %v381, %v253
  %v383 = vadd.f32 %v382, %v261
  %v384 = vrot.slane %v383, 4
  %v385 = vadd.f32 %v383, %v384
  %v386 = vrot.slane %v385, 2
  %v387 = vadd.f32 %v385, %v386
  %v388 = vrot.slane %v387, 1
  %v389 = vadd.f32 %v387, %v388
  %v390 = vadd.f32 %v142, %v150
  %v391 = vadd.f32 %v390, %v158
  %v392 = vadd.f32 %v391, %v166
  %v393 = vadd.f32 %v392, %v174
  %v394 = vadd.f32 %v393, %v182
  %v395 = vadd.f32 %v394, %v190
  %v396 = vadd.f32 %v395, %v198
  %v397 = vadd.f32 %v396, %v206
  %v398 = vadd.f32 %v397, %v214
  %v399 = vadd.f32 %v398, %v222
  %v400 = vadd.f32 %v399, %v230
  %v401 = vadd.f32 %v400, %v238
  %v402 = vadd.f32 %v401, %v246
  %v403 = vadd.f32 %v402, %v254
  %v404 = vadd.f32 %v403, %v262
  %v405 = vrot.slane %v404, 4
  %v406 = vadd.f32 %v404, %v405
  %v407 = vrot.slane %v406, 2
  %v408 = vadd.f32 %v406, %v407
  %v409 = vrot.slane %v408, 1
  %v410 = vadd.f32 %v408, %v409
  %v411 = vadd.f32 %v143, %v151
  %v412 = vadd.f32 %v411, %v159
  %v413 = vadd.f32 %v412, %v167
  %v414 = vadd.f32 %v413, %v175
  %v415 = vadd.f32 %v414, %v183
  %v416 = vadd.f32 %v415, %v191
  %v417 = vadd.f32 %v416, %v199
  %v418 = vadd.f32 %v417, %v207
  %v419 = vadd.f32 %v418, %v215
  %v420 = vadd.f32 %v419, %v223
  %v421 = vadd.f32 %v420, %v231
  %v422 = vadd.f32 %v421, %v239
  %v423 = vadd.f32 %v422, %v247
  %v424 = vadd.f32 %v423, %v255
  %v425 = vadd.f32 %v424, %v263
  %v426 = vrot.slane %v425, 4
  %v427 = vadd.f32 %v425, %v426
  %v428 = vrot.slane %v427, 2
  %v429 = vadd.f32 %v427, %v428
  %v430 = vrot.slane %v429, 1
  %v431 = vadd.f32 %v429, %v430
  %v432 = vmax.f32 %v284, 1e-24
  %v433 = vmax.f32 %v305, 1e-24
  %v434 = vmax.f32 %v326, 1e-24
  %v435 = vmax.f32 %v347, 1e-24
  %v436 = vmax.f32 %v368, 1e-24
  %v437 = vmax.f32 %v389, 1e-24
  %v438 = vmax.f32 %v410, 1e-24
  %v439 = vmax.f32 %v431, 1e-24
  %v440 = vrsqrt.pop %v432
  %v441 = vrsqrt.pop %v433
  %v442 = vrsqrt.pop %v434
  %v443 = vrsqrt.pop %v435
  %v444 = vrsqrt.pop %v436
  %v445 = vrsqrt.pop %v437
  %v446 = vrsqrt.pop %v438
  %v447 = vrsqrt.pop %v439
  %v448 = vmul.f32 %v440, 64.0
  %v449 = vmul.f32 %v441, 64.0
  %v450 = vmul.f32 %v442, 64.0
  %v451 = vmul.f32 %v443, 64.0
  %v452 = vmul.f32 %v444, 64.0
  %v453 = vmul.f32 %v445, 64.0
  %v454 = vmul.f32 %v446, 64.0
  %v455 = vmul.f32 %v447, 64.0
  %v456 = vmul.f32 %v8, %v448
  %v457 = vmul.f32 %v9, %v449
  %v458 = vmul.f32 %v10, %v450
  %v459 = vmul.f32 %v11, %v451
  %v460 = vmul.f32 %v12, %v452
  %v461 = vmul.f32 %v13, %v453
  %v462 = vmul.f32 %v14, %v454
  %v463 = vmul.f32 %v15, %v455
  %v464 = vmul.f32 %v16, %v448
  %v465 = vmul.f32 %v17, %v449
  %v466 = vmul.f32 %v18, %v450
  %v467 = vmul.f32 %v19, %v451
  %v468 = vmul.f32 %v20, %v452
  %v469 = vmul.f32 %v21, %v453
  %v470 = vmul.f32 %v22, %v454
  %v471 = vmul.f32 %v23, %v455
  %v472 = vmul.f32 %v24, %v448
  %v473 = vmul.f32 %v25, %v449
  %v474 = vmul.f32 %v26, %v450
  %v475 = vmul.f32 %v27, %v451
  %v476 = vmul.f32 %v28, %v452
  %v477 = vmul.f32 %v29, %v453
  %v478 = vmul.f32 %v30, %v454
  %v479 = vmul.f32 %v31, %v455
  %v480 = vmul.f32 %v32, %v448
  %v481 = vmul.f32 %v33, %v449
  %v482 = vmul.f32 %v34, %v450
  %v483 = vmul.f32 %v35, %v451
  %v484 = vmul.f32 %v36, %v452
  %v485 = vmul.f32 %v37, %v453
  %v486 = vmul.f32 %v38, %v454
  %v487 = vmul.f32 %v39, %v455
  %v488 = vmul.f32 %v40, %v448
  %v489 = vmul.f32 %v41, %v449
  %v490 = vmul.f32 %v42, %v450
  %v491 = vmul.f32 %v43, %v451
  %v492 = vmul.f32 %v44, %v452
  %v493 = vmul.f32 %v45, %v453
  %v494 = vmul.f32 %v46, %v454
  %v495 = vmul.f32 %v47, %v455
  %v496 = vmul.f32 %v48, %v448
  %v497 = vmul.f32 %v49, %v449
  %v498 = vmul.f32 %v50, %v450
  %v499 = vmul.f32 %v51, %v451
  %v500 = vmul.f32 %v52, %v452
  %v501 = vmul.f32 %v53, %v453
  %v502 = vmul.f32 %v54, %v454
  %v503 = vmul.f32 %v55, %v455
  %v504 = vmul.f32 %v56, %v448
  %v505 = vmul.f32 %v57, %v449
  %v506 = vmul.f32 %v58, %v450
  %v507 = vmul.f32 %v59, %v451
  %v508 = vmul.f32 %v60, %v452
  %v509 = vmul.f32 %v61, %v453
  %v510 = vmul.f32 %v62, %v454
  %v511 = vmul.f32 %v63, %v455
  %v512 = vmul.f32 %v64, %v448
  %v513 = vmul.f32 %v65, %v449
  %v514 = vmul.f32 %v66, %v450
  %v515 = vmul.f32 %v67, %v451
  %v516 = vmul.f32 %v68, %v452
  %v517 = vmul.f32 %v69, %v453
  %v518 = vmul.f32 %v70, %v454
  %v519 = vmul.f32 %v71, %v455
  %v520 = vmul.f32 %v72, %v448
  %v521 = vmul.f32 %v73, %v449
  %v522 = vmul.f32 %v74, %v450
  %v523 = vmul.f32 %v75, %v451
  %v524 = vmul.f32 %v76, %v452
  %v525 = vmul.f32 %v77, %v453
  %v526 = vmul.f32 %v78, %v454
  %v527 = vmul.f32 %v79, %v455
  %v528 = vmul.f32 %v80, %v448
  %v529 = vmul.f32 %v81, %v449
  %v530 = vmul.f32 %v82, %v450
  %v531 = vmul.f32 %v83, %v451
  %v532 = vmul.f32 %v84, %v452
  %v533 = vmul.f32 %v85, %v453
  %v534 = vmul.f32 %v86, %v454
  %v535 = vmul.f32 %v87, %v455
  %v536 = vmul.f32 %v88, %v448
  %v537 = vmul.f32 %v89, %v449
  %v538 = vmul.f32 %v90, %v450
  %v539 = vmul.f32 %v91, %v451
  %v540 = vmul.f32 %v92, %v452
  %v541 = vmul.f32 %v93, %v453
  %v542 = vmul.f32 %v94, %v454
  %v543 = vmul.f32 %v95, %v455
  %v544 = vmul.f32 %v96, %v448
  %v545 = vmul.f32 %v97, %v449
  %v546 = vmul.f32 %v98, %v450
  %v547 = vmul.f32 %v99, %v451
  %v548 = vmul.f32 %v100, %v452
  %v549 = vmul.f32 %v101, %v453
  %v550 = vmul.f32 %v102, %v454
  %v551 = vmul.f32 %v103, %v455
  %v552 = vmul.f32 %v104, %v448
  %v553 = vmul.f32 %v105, %v449
  %v554 = vmul.f32 %v106, %v450
  %v555 = vmul.f32 %v107, %v451
  %v556 = vmul.f32 %v108, %v452
  %v557 = vmul.f32 %v109, %v453
  %v558 = vmul.f32 %v110, %v454
  %v559 = vmul.f32 %v111, %v455
  %v560 = vmul.f32 %v112, %v448
  %v561 = vmul.f32 %v113, %v449
  %v562 = vmul.f32 %v114, %v450
  %v563 = vmul.f32 %v115, %v451
  %v564 = vmul.f32 %v116, %v452
  %v565 = vmul.f32 %v117, %v453
  %v566 = vmul.f32 %v118, %v454
  %v567 = vmul.f32 %v119, %v455
  %v568 = vmul.f32 %v120, %v448
  %v569 = vmul.f32 %v121, %v449
  %v570 = vmul.f32 %v122, %v450
  %v571 = vmul.f32 %v123, %v451
  %v572 = vmul.f32 %v124, %v452
  %v573 = vmul.f32 %v125, %v453
  %v574 = vmul.f32 %v126, %v454
  %v575 = vmul.f32 %v127, %v455
  %v576 = vmul.f32 %v128, %v448
  %v577 = vmul.f32 %v129, %v449
  %v578 = vmul.f32 %v130, %v450
  %v579 = vmul.f32 %v131, %v451
  %v580 = vmul.f32 %v132, %v452
  %v581 = vmul.f32 %v133, %v453
  %v582 = vmul.f32 %v134, %v454
  %v583 = vmul.f32 %v135, %v455
  %v584 = vpack.c.bf16 %v464, %v456
  %v585 = vpack.c.bf16 %v465, %v457
  %v586 = vpack.c.bf16 %v466, %v458
  %v587 = vpack.c.bf16 %v467, %v459
  %v588 = vpack.c.bf16 %v468, %v460
  %v589 = vpack.c.bf16 %v469, %v461
  %v590 = vpack.c.bf16 %v470, %v462
  %v591 = vpack.c.bf16 %v471, %v463
  %v592 = vpack.c.bf16 %v480, %v472
  %v593 = vpack.c.bf16 %v481, %v473
  %v594 = vpack.c.bf16 %v482, %v474
  %v595 = vpack.c.bf16 %v483, %v475
  %v596 = vpack.c.bf16 %v484, %v476
  %v597 = vpack.c.bf16 %v485, %v477
  %v598 = vpack.c.bf16 %v486, %v478
  %v599 = vpack.c.bf16 %v487, %v479
  %v600 = vpack.c.bf16 %v496, %v488
  %v601 = vpack.c.bf16 %v497, %v489
  %v602 = vpack.c.bf16 %v498, %v490
  %v603 = vpack.c.bf16 %v499, %v491
  %v604 = vpack.c.bf16 %v500, %v492
  %v605 = vpack.c.bf16 %v501, %v493
  %v606 = vpack.c.bf16 %v502, %v494
  %v607 = vpack.c.bf16 %v503, %v495
  %v608 = vpack.c.bf16 %v512, %v504
  %v609 = vpack.c.bf16 %v513, %v505
  %v610 = vpack.c.bf16 %v514, %v506
  %v611 = vpack.c.bf16 %v515, %v507
  %v612 = vpack.c.bf16 %v516, %v508
  %v613 = vpack.c.bf16 %v517, %v509
  %v614 = vpack.c.bf16 %v518, %v510
  %v615 = vpack.c.bf16 %v519, %v511
  %v616 = vpack.c.bf16 %v528, %v520
  %v617 = vpack.c.bf16 %v529, %v521
  %v618 = vpack.c.bf16 %v530, %v522
  %v619 = vpack.c.bf16 %v531, %v523
  %v620 = vpack.c.bf16 %v532, %v524
  %v621 = vpack.c.bf16 %v533, %v525
  %v622 = vpack.c.bf16 %v534, %v526
  %v623 = vpack.c.bf16 %v535, %v527
  %v624 = vpack.c.bf16 %v544, %v536
  %v625 = vpack.c.bf16 %v545, %v537
  %v626 = vpack.c.bf16 %v546, %v538
  %v627 = vpack.c.bf16 %v547, %v539
  %v628 = vpack.c.bf16 %v548, %v540
  %v629 = vpack.c.bf16 %v549, %v541
  %v630 = vpack.c.bf16 %v550, %v542
  %v631 = vpack.c.bf16 %v551, %v543
  %v632 = vpack.c.bf16 %v560, %v552
  %v633 = vpack.c.bf16 %v561, %v553
  %v634 = vpack.c.bf16 %v562, %v554
  %v635 = vpack.c.bf16 %v563, %v555
  %v636 = vpack.c.bf16 %v564, %v556
  %v637 = vpack.c.bf16 %v565, %v557
  %v638 = vpack.c.bf16 %v566, %v558
  %v639 = vpack.c.bf16 %v567, %v559
  %v640 = vpack.c.bf16 %v576, %v568
  %v641 = vpack.c.bf16 %v577, %v569
  %v642 = vpack.c.bf16 %v578, %v570
  %v643 = vpack.c.bf16 %v579, %v571
  %v644 = vpack.c.bf16 %v580, %v572
  %v645 = vpack.c.bf16 %v581, %v573
  %v646 = vpack.c.bf16 %v582, %v574
  %v647 = vpack.c.bf16 %v583, %v575
  %v712 = vunpack.c.l.b16 %v584
  %v713 = vunpack.c.l.b16 %v585
  %v714 = vunpack.c.l.b16 %v586
  %v715 = vunpack.c.l.b16 %v587
  %v716 = vunpack.c.l.b16 %v588
  %v717 = vunpack.c.l.b16 %v589
  %v718 = vunpack.c.l.b16 %v590
  %v719 = vunpack.c.l.b16 %v591
  %v720 = vunpack.c.h.b16 %v584
  %v721 = vunpack.c.h.b16 %v585
  %v722 = vunpack.c.h.b16 %v586
  %v723 = vunpack.c.h.b16 %v587
  %v724 = vunpack.c.h.b16 %v588
  %v725 = vunpack.c.h.b16 %v589
  %v726 = vunpack.c.h.b16 %v590
  %v727 = vunpack.c.h.b16 %v591
  %v728 = vunpack.c.l.b16 %v592
  %v729 = vunpack.c.l.b16 %v593
  %v730 = vunpack.c.l.b16 %v594
  %v731 = vunpack.c.l.b16 %v595
  %v732 = vunpack.c.l.b16 %v596
  %v733 = vunpack.c.l.b16 %v597
  %v734 = vunpack.c.l.b16 %v598
  %v735 = vunpack.c.l.b16 %v599
  %v736 = vunpack.c.h.b16 %v592
  %v737 = vunpack.c.h.b16 %v593
  %v738 = vunpack.c.h.b16 %v594
  %v739 = vunpack.c.h.b16 %v595
  %v740 = vunpack.c.h.b16 %v596
  %v741 = vunpack.c.h.b16 %v597
  %v742 = vunpack.c.h.b16 %v598
  %v743 = vunpack.c.h.b16 %v599
  %v744 = vunpack.c.l.b16 %v600
  %v745 = vunpack.c.l.b16 %v601
  %v746 = vunpack.c.l.b16 %v602
  %v747 = vunpack.c.l.b16 %v603
  %v748 = vunpack.c.l.b16 %v604
  %v749 = vunpack.c.l.b16 %v605
  %v750 = vunpack.c.l.b16 %v606
  %v751 = vunpack.c.l.b16 %v607
  %v752 = vunpack.c.h.b16 %v600
  %v753 = vunpack.c.h.b16 %v601
  %v754 = vunpack.c.h.b16 %v602
  %v755 = vunpack.c.h.b16 %v603
  %v756 = vunpack.c.h.b16 %v604
  %v757 = vunpack.c.h.b16 %v605
  %v758 = vunpack.c.h.b16 %v606
  %v759 = vunpack.c.h.b16 %v607
  %v760 = vunpack.c.l.b16 %v608
  %v761 = vunpack.c.l.b16 %v609
  %v762 = vunpack.c.l.b16 %v610
  %v763 = vunpack.c.l.b16 %v611
  %v764 = vunpack.c.l.b16 %v612
  %v765 = vunpack.c.l.b16 %v613
  %v766 = vunpack.c.l.b16 %v614
  %v767 = vunpack.c.l.b16 %v615
  %v768 = vunpack.c.h.b16 %v608
  %v769 = vunpack.c.h.b16 %v609
  %v770 = vunpack.c.h.b16 %v610
  %v771 = vunpack.c.h.b16 %v611
  %v772 = vunpack.c.h.b16 %v612
  %v773 = vunpack.c.h.b16 %v613
  %v774 = vunpack.c.h.b16 %v614
  %v775 = vunpack.c.h.b16 %v615
  %v776 = vunpack.c.l.b16 %v616
  %v777 = vunpack.c.l.b16 %v617
  %v778 = vunpack.c.l.b16 %v618
  %v779 = vunpack.c.l.b16 %v619
  %v780 = vunpack.c.l.b16 %v620
  %v781 = vunpack.c.l.b16 %v621
  %v782 = vunpack.c.l.b16 %v622
  %v783 = vunpack.c.l.b16 %v623
  %v784 = vunpack.c.h.b16 %v616
  %v785 = vunpack.c.h.b16 %v617
  %v786 = vunpack.c.h.b16 %v618
  %v787 = vunpack.c.h.b16 %v619
  %v788 = vunpack.c.h.b16 %v620
  %v789 = vunpack.c.h.b16 %v621
  %v790 = vunpack.c.h.b16 %v622
  %v791 = vunpack.c.h.b16 %v623
  %v792 = vunpack.c.l.b16 %v624
  %v793 = vunpack.c.l.b16 %v625
  %v794 = vunpack.c.l.b16 %v626
  %v795 = vunpack.c.l.b16 %v627
  %v796 = vunpack.c.l.b16 %v628
  %v797 = vunpack.c.l.b16 %v629
  %v798 = vunpack.c.l.b16 %v630
  %v799 = vunpack.c.l.b16 %v631
  %v800 = vunpack.c.h.b16 %v624
  %v801 = vunpack.c.h.b16 %v625
  %v802 = vunpack.c.h.b16 %v626
  %v803 = vunpack.c.h.b16 %v627
  %v804 = vunpack.c.h.b16 %v628
  %v805 = vunpack.c.h.b16 %v629
  %v806 = vunpack.c.h.b16 %v630
  %v807 = vunpack.c.h.b16 %v631
  %v808 = vunpack.c.l.b16 %v632
  %v809 = vunpack.c.l.b16 %v633
  %v810 = vunpack.c.l.b16 %v634
  %v811 = vunpack.c.l.b16 %v635
  %v812 = vunpack.c.l.b16 %v636
  %v813 = vunpack.c.l.b16 %v637
  %v814 = vunpack.c.l.b16 %v638
  %v815 = vunpack.c.l.b16 %v639
  %v816 = vunpack.c.h.b16 %v632
  %v817 = vunpack.c.h.b16 %v633
  %v818 = vunpack.c.h.b16 %v634
  %v819 = vunpack.c.h.b16 %v635
  %v820 = vunpack.c.h.b16 %v636
  %v821 = vunpack.c.h.b16 %v637
  %v822 = vunpack.c.h.b16 %v638
  %v823 = vunpack.c.h.b16 %v639
  %v824 = vunpack.c.l.b16 %v640
  %v825 = vunpack.c.l.b16 %v641
  %v826 = vunpack.c.l.b16 %v642
  %v827 = vunpack.c.l.b16 %v643
  %v828 = vunpack.c.l.b16 %v644
  %v829 = vunpack.c.l.b16 %v645
  %v830 = vunpack.c.l.b16 %v646
  %v831 = vunpack.c.l.b16 %v647
  %v832 = vunpack.c.h.b16 %v640
  %v833 = vunpack.c.h.b16 %v641
  %v834 = vunpack.c.h.b16 %v642
  %v835 = vunpack.c.h.b16 %v643
  %v836 = vunpack.c.h.b16 %v644
  %v837 = vunpack.c.h.b16 %v645
  %v838 = vunpack.c.h.b16 %v646
  %v839 = vunpack.c.h.b16 %v647
  %v840 = vpack.c.b16 %v713, %v712
  %v841 = vpack.c.b16 %v715, %v714
  %v842 = vpack.c.b16 %v717, %v716
  %v843 = vpack.c.b16 %v719, %v718
  %v844 = vpack.c.b16 %v721, %v720
  %v845 = vpack.c.b16 %v723, %v722
  %v846 = vpack.c.b16 %v725, %v724
  %v847 = vpack.c.b16 %v727, %v726
  %v848 = vpack.c.b16 %v729, %v728
  %v849 = vpack.c.b16 %v731, %v730
  %v850 = vpack.c.b16 %v733, %v732
  %v851 = vpack.c.b16 %v735, %v734
  %v852 = vpack.c.b16 %v737, %v736
  %v853 = vpack.c.b16 %v739, %v738
  %v854 = vpack.c.b16 %v741, %v740
  %v855 = vpack.c.b16 %v743, %v742
  %v856 = vpack.c.b16 %v745, %v744
  %v857 = vpack.c.b16 %v747, %v746
  %v858 = vpack.c.b16 %v749, %v748
  %v859 = vpack.c.b16 %v751, %v750
  %v860 = vpack.c.b16 %v753, %v752
  %v861 = vpack.c.b16 %v755, %v754
  %v862 = vpack.c.b16 %v757, %v756
  %v863 = vpack.c.b16 %v759, %v758
  %v864 = vpack.c.b16 %v761, %v760
  %v865 = vpack.c.b16 %v763, %v762
  %v866 = vpack.c.b16 %v765, %v764
  %v867 = vpack.c.b16 %v767, %v766
  %v868 = vpack.c.b16 %v769, %v768
  %v869 = vpack.c.b16 %v771, %v770
  %v870 = vpack.c.b16 %v773, %v772
  %v871 = vpack.c.b16 %v775, %v774
  %v872 = vpack.c.b16 %v777, %v776
  %v873 = vpack.c.b16 %v779, %v778
  %v874 = vpack.c.b16 %v781, %v780
  %v875 = vpack.c.b16 %v783, %v782
  %v876 = vpack.c.b16 %v785, %v784
  %v877 = vpack.c.b16 %v787, %v786
  %v878 = vpack.c.b16 %v789, %v788
  %v879 = vpack.c.b16 %v791, %v790
  %v880 = vpack.c.b16 %v793, %v792
  %v881 = vpack.c.b16 %v795, %v794
  %v882 = vpack.c.b16 %v797, %v796
  %v883 = vpack.c.b16 %v799, %v798
  %v884 = vpack.c.b16 %v801, %v800
  %v885 = vpack.c.b16 %v803, %v802
  %v886 = vpack.c.b16 %v805, %v804
  %v887 = vpack.c.b16 %v807, %v806
  %v888 = vpack.c.b16 %v809, %v808
  %v889 = vpack.c.b16 %v811, %v810
  %v890 = vpack.c.b16 %v813, %v812
  %v891 = vpack.c.b16 %v815, %v814
  %v892 = vpack.c.b16 %v817, %v816
  %v893 = vpack.c.b16 %v819, %v818
  %v894 = vpack.c.b16 %v821, %v820
  %v895 = vpack.c.b16 %v823, %v822
  %v896 = vpack.c.b16 %v825, %v824
  %v897 = vpack.c.b16 %v827, %v826
  %v898 = vpack.c.b16 %v829, %v828
  %v899 = vpack.c.b16 %v831, %v830
  %v900 = vpack.c.b16 %v833, %v832
  %v901 = vpack.c.b16 %v835, %v834
  %v902 = vpack.c.b16 %v837, %v836
  %v903 = vpack.c.b16 %v839, %v838
  %968 = vst [vmem:[%s1] sm:$0xff] %v840
  %969 = vst [vmem:[%s1 + $0x8] sm:$0xff] %v841
  %970 = vst [vmem:[%s1 + $0x10] sm:$0xff] %v842
  %971 = vst [vmem:[%s1 + $0x18] sm:$0xff] %v843
  %972 = vst [vmem:[%s1 + $0x20] sm:$0xff] %v844
  %973 = vst [vmem:[%s1 + $0x28] sm:$0xff] %v845
  %974 = vst [vmem:[%s1 + $0x30] sm:$0xff] %v846
  %975 = vst [vmem:[%s1 + $0x38] sm:$0xff] %v847
  %976 = vst [vmem:[%s1 + $0x40] sm:$0xff] %v848
  %977 = vst [vmem:[%s1 + $0x48] sm:$0xff] %v849
  %978 = vst [vmem:[%s1 + $0x50] sm:$0xff] %v850
  %979 = vst [vmem:[%s1 + $0x58] sm:$0xff] %v851
  %980 = vst [vmem:[%s1 + $0x60] sm:$0xff] %v852
  %981 = vst [vmem:[%s1 + $0x68] sm:$0xff] %v853
  %982 = vst [vmem:[%s1 + $0x70] sm:$0xff] %v854
  %983 = vst [vmem:[%s1 + $0x78] sm:$0xff] %v855
  %984 = vst [vmem:[%s1 + $0x80] sm:$0xff] %v856
  %985 = vst [vmem:[%s1 + $0x88] sm:$0xff] %v857
  %986 = vst [vmem:[%s1 + $0x90] sm:$0xff] %v858
  %987 = vst [vmem:[%s1 + $0x98] sm:$0xff] %v859
  %988 = vst [vmem:[%s1 + $0xa0] sm:$0xff] %v860
  %989 = vst [vmem:[%s1 + $0xa8] sm:$0xff] %v861
  %990 = vst [vmem:[%s1 + $0xb0] sm:$0xff] %v862
  %991 = vst [vmem:[%s1 + $0xb8] sm:$0xff] %v863
  %992 = vst [vmem:[%s1 + $0xc0] sm:$0xff] %v864
  %993 = vst [vmem:[%s1 + $0xc8] sm:$0xff] %v865
  %994 = vst [vmem:[%s1 + $0xd0] sm:$0xff] %v866
  %995 = vst [vmem:[%s1 + $0xd8] sm:$0xff] %v867
  %996 = vst [vmem:[%s1 + $0xe0] sm:$0xff] %v868
  %997 = vst [vmem:[%s1 + $0xe8] sm:$0xff] %v869
  %998 = vst [vmem:[%s1 + $0xf0] sm:$0xff] %v870
  %999 = vst [vmem:[%s1 + $0xf8] sm:$0xff] %v871
  %1000 = vst [vmem:[%s1 + $0x100] sm:$0xff] %v872
  %1001 = vst [vmem:[%s1 + $0x108] sm:$0xff] %v873
  %1002 = vst [vmem:[%s1 + $0x110] sm:$0xff] %v874
  %1003 = vst [vmem:[%s1 + $0x118] sm:$0xff] %v875
  %1004 = vst [vmem:[%s1 + $0x120] sm:$0xff] %v876
  %1005 = vst [vmem:[%s1 + $0x128] sm:$0xff] %v877
  %1006 = vst [vmem:[%s1 + $0x130] sm:$0xff] %v878
  %1007 = vst [vmem:[%s1 + $0x138] sm:$0xff] %v879
  %1008 = vst [vmem:[%s1 + $0x140] sm:$0xff] %v880
  %1009 = vst [vmem:[%s1 + $0x148] sm:$0xff] %v881
  %1010 = vst [vmem:[%s1 + $0x150] sm:$0xff] %v882
  %1011 = vst [vmem:[%s1 + $0x158] sm:$0xff] %v883
  %1012 = vst [vmem:[%s1 + $0x160] sm:$0xff] %v884
  %1013 = vst [vmem:[%s1 + $0x168] sm:$0xff] %v885
  %1014 = vst [vmem:[%s1 + $0x170] sm:$0xff] %v886
  %1015 = vst [vmem:[%s1 + $0x178] sm:$0xff] %v887
  %1016 = vst [vmem:[%s1 + $0x180] sm:$0xff] %v888
  %1017 = vst [vmem:[%s1 + $0x188] sm:$0xff] %v889
  %1018 = vst [vmem:[%s1 + $0x190] sm:$0xff] %v890
  %1019 = vst [vmem:[%s1 + $0x198] sm:$0xff] %v891
  %1020 = vst [vmem:[%s1 + $0x1a0] sm:$0xff] %v892
  %1021 = vst [vmem:[%s1 + $0x1a8] sm:$0xff] %v893
  %1022 = vst [vmem:[%s1 + $0x1b0] sm:$0xff] %v894
  %1023 = vst [vmem:[%s1 + $0x1b8] sm:$0xff] %v895
  %1024 = vst [vmem:[%s1 + $0x1c0] sm:$0xff] %v896
  %1025 = vst [vmem:[%s1 + $0x1c8] sm:$0xff] %v897
  %1026 = vst [vmem:[%s1 + $0x1d0] sm:$0xff] %v898
  %1027 = vst [vmem:[%s1 + $0x1d8] sm:$0xff] %v899
  %1028 = vst [vmem:[%s1 + $0x1e0] sm:$0xff] %v900
  %1029 = vst [vmem:[%s1 + $0x1e8] sm:$0xff] %v901
  %1030 = vst [vmem:[%s1 + $0x1f0] sm:$0xff] %v902
  %1031 = vst [vmem:[%s1 + $0x1f8] sm:$0xff] %v903
  // Predicated region
  $region6: #{arcface_loss.2} parent=0 // pred_check
    _
  $region7: #{arcface_loss.2} parent=0 // pred_check_branch
    %1033 = sbr.rel (0) target = $region9
  $region8: #{arcface_loss.2} parent=0 // pred_region
    _
  $region9: #{arcface_loss.2} parent=0 // pred_fallthru
    _
  // Predicated region
  $region10: #{arcface_loss.2} parent=0 // pred_check
    _
  $region11: #{arcface_loss.2} parent=0 // pred_check_branch
    %1035 = sbr.rel (0) target = $region13
  $region12: #{arcface_loss.2} parent=0 // pred_region
    _
  $region13: #{arcface_loss.2} parent=0 // pred_fallthru
    _

// kernel: arcface_loss.3
$region0: #{arcface_loss.3}
  #allocation0 [shape = 'u32[]', space=smem, size = 0x4, offset = 0x4, fixed_abs, tag = 'smem constant byte address 0x4 - core index']
  #allocation1 [shape = 'u32[144,128]{1,0:T(1,128)}', space=vmem, size = 0x12000, scoped, tag = 'internal scratch']
  #allocation2 [shape = 'f32[16,1]{1,0:T(8,128)}', space=vmem, size = 0x2000, scoped, tag = 'scratch operand']
  #allocation3 [shape = 'f32[16,1]{1,0:T(8,128)}', space=vmem, size = 0x2000, scoped, tag = 'scratch operand']
  #allocation4 [shape = 'f32[16,1]{1,0:T(8,128)}', space=vmem, size = 0x2000, scoped, tag = 'scratch operand']
  %s0 = inlined_call_operand.vmem [shape: bf16[16,128], index: 0, kind: input, shape index: {}]
  %s1 = inlined_call_operand.vmem [shape: bf16[128,1024], index: 1, kind: input, shape index: {}]
  %s2 = inlined_call_operand.vmem [shape: s32[16,1], index: 2, kind: input, shape index: {}]
  %s3 = inlined_call_operand.vmem [shape: f32[1,1024], index: 3, kind: input, shape index: {}]
  %s4 = inlined_call_operand.vmem [shape: f32[16,1], index: 4, kind: output, shape index: {}]
  %s5 = sld [smem:[#allocation0]]
  $region80: #{arcface_loss.3} parent=0
    _
  %s7 = ssub.s32 1, %s5
  %s8 = scalar_select 0, %s7, %s5
  $region1: #{arcface_loss.3} parent=0
    #allocation5 [shape = 'u8[262144]{0}', space=vmem, size = 0x40000, scoped, tag = 'input window, operand 1']
    loop: start=0, step=1, limit=4
    $region2: #{arcface_loss.3} parent=1 // loop_pre_header
      _
    $region3: #{arcface_loss.3} parent=1 // loop_header
      %s10 = sphi 0, %s14
      %p11 = scmp.ge.s32.totalorder %s10, 4
      %s17 = sphi 0, %s29
      %s18 = sphi 0, %s25
      %s19 = sphi 0, %s17
      %s20 = sphi 0, %s18
      %s21 = sphi 0, %s19
      %s22 = sphi 0, %s20
      %s32 = sphi 0, %s34
      %s35 = sphi 0, %s32
      %s36 = sphi 0, %s35
      %s52 = sphi 0, %s36
      %s58 = sphi 0, %s60
      %s61 = sphi 0, %s58
      %s62 = sphi 0, %s61
      %s78 = sphi 0, %s62
      %s84 = sphi 0, %s86
      %s87 = sphi 0, %s84
      %s88 = sphi 0, %s87
      %s104 = sphi 0, %s88
      %s110 = sphi 0, %s112
      %s113 = sphi 0, %s110
      %s114 = sphi 0, %s113
      %s130 = sphi 0, %s114
      %s136 = sphi 0, %s138
      %s139 = sphi 0, %s136
      %s140 = sphi 0, %s139
      %s156 = sphi 0, %s140
    $region4: #{arcface_loss.3} parent=1 // loop_header_branch
      %13 = sbr.rel (%p11) target = $region8
    $region5: #{arcface_loss.3} parent=1 // loop_body
      %s15 = ssub.s32 %s10, 1
      %s16 = ssub.s32 %s10, 2
      %s23 = sadd.s32 1, %s18
      %p24 = scmp.ge.s32.totalorder %s23, 2
      %s25 = scalar_select %p24, 0, %s23
      %s26 = sadd.s32 1, %s17
      %s27 = scalar_select %p24, %s26, %s17
      %p28 = scmp.ge.s32.totalorder %s27, 1
      %s29 = scalar_select %p28, 0, %s27
      %s30 = ssub.s32 %s17, %s29
      %p31 = scmp.eq.s32.totalorder %s30, 0
      %s33 = sadd.s32 %s32, 1
      %s34 = scalar_select %p31, %s32, %s33
      %p37 = pneg %p31
      %p38 = scmp.eq.s32.totalorder %s10, 1
      %p39 = por %p37, %p38
      %p40 = scmp.ne.s32.totalorder %s32, %s35
      %p41 = scmp.eq.s32.totalorder %s10, 0
      %p42 = por %p40, %p41
      %p43 = scmp.ne.s32.totalorder %s32, %s35
      %p44 = scmp.eq.s32.totalorder %s15, 1
      %p45 = por %p43, %p44
      %p46 = scmp.ne.s32.totalorder %s35, %s36
      %p47 = scmp.eq.s32.totalorder %s15, 0
      %p48 = por %p46, %p47
      %p49 = scmp.ne.s32.totalorder %s35, %s36
      %p50 = scmp.eq.s32.totalorder %s16, 1
      %p51 = por %p49, %p50
      %p53 = scmp.ne.s32.totalorder %s36, %s52
      %p54 = scmp.eq.s32.totalorder %s16, 0
      %p55 = por %p53, %p54
      %s56 = ssub.s32 %s18, %s25
      %p57 = scmp.eq.s32.totalorder %s56, 0
      %s59 = sadd.s32 %s58, 1
      %s60 = scalar_select %p57, %s58, %s59
      %p63 = pneg %p57
      %p64 = scmp.eq.s32.totalorder %s10, 1
      %p65 = por %p63, %p64
      %p66 = scmp.ne.s32.totalorder %s58, %s61
      %p67 = scmp.eq.s32.totalorder %s10, 0
      %p68 = por %p66, %p67
      %p69 = scmp.ne.s32.totalorder %s58, %s61
      %p70 = scmp.eq.s32.totalorder %s15, 1
      %p71 = por %p69, %p70
      %p72 = scmp.ne.s32.totalorder %s61, %s62
      %p73 = scmp.eq.s32.totalorder %s15, 0
      %p74 = por %p72, %p73
      %p75 = scmp.ne.s32.totalorder %s61, %s62
      %p76 = scmp.eq.s32.totalorder %s16, 1
      %p77 = por %p75, %p76
      %p79 = scmp.ne.s32.totalorder %s62, %s78
      %p80 = scmp.eq.s32.totalorder %s16, 0
      %p81 = por %p79, %p80
      %s82 = ssub.s32 %s17, %s29
      %p83 = scmp.eq.s32.totalorder %s82, 0
      %s85 = sadd.s32 %s84, 1
      %s86 = scalar_select %p83, %s84, %s85
      %p89 = pneg %p83
      %p90 = scmp.eq.s32.totalorder %s10, 1
      %p91 = por %p89, %p90
      %p92 = scmp.ne.s32.totalorder %s84, %s87
      %p93 = scmp.eq.s32.totalorder %s10, 0
      %p94 = por %p92, %p93
      %p95 = scmp.ne.s32.totalorder %s84, %s87
      %p96 = scmp.eq.s32.totalorder %s15, 1
      %p97 = por %p95, %p96
      %p98 = scmp.ne.s32.totalorder %s87, %s88
      %p99 = scmp.eq.s32.totalorder %s15, 0
      %p100 = por %p98, %p99
      %p101 = scmp.ne.s32.totalorder %s87, %s88
      %p102 = scmp.eq.s32.totalorder %s16, 1
      %p103 = por %p101, %p102
      %p105 = scmp.ne.s32.totalorder %s88, %s104
      %p106 = scmp.eq.s32.totalorder %s16, 0
      %p107 = por %p105, %p106
      %s108 = ssub.s32 %s18, %s25
      %p109 = scmp.eq.s32.totalorder %s108, 0
      %s111 = sadd.s32 %s110, 1
      %s112 = scalar_select %p109, %s110, %s111
      %p115 = pneg %p109
      %p116 = scmp.eq.s32.totalorder %s10, 1
      %p117 = por %p115, %p116
      %p118 = scmp.ne.s32.totalorder %s110, %s113
      %p119 = scmp.eq.s32.totalorder %s10, 0
      %p120 = por %p118, %p119
      %p121 = scmp.ne.s32.totalorder %s110, %s113
      %p122 = scmp.eq.s32.totalorder %s15, 1
      %p123 = por %p121, %p122
      %p124 = scmp.ne.s32.totalorder %s113, %s114
      %p125 = scmp.eq.s32.totalorder %s15, 0
      %p126 = por %p124, %p125
      %p127 = scmp.ne.s32.totalorder %s113, %s114
      %p128 = scmp.eq.s32.totalorder %s16, 1
      %p129 = por %p127, %p128
      %p131 = scmp.ne.s32.totalorder %s114, %s130
      %p132 = scmp.eq.s32.totalorder %s16, 0
      %p133 = por %p131, %p132
      %s134 = ssub.s32 %s17, %s29
      %p135 = scmp.eq.s32.totalorder %s134, 0
      %s137 = sadd.s32 %s136, 1
      %s138 = scalar_select %p135, %s136, %s137
      %p141 = pneg %p135
      %p142 = scmp.eq.s32.totalorder %s10, 1
      %p143 = por %p141, %p142
      %p144 = scmp.ne.s32.totalorder %s136, %s139
      %p145 = scmp.eq.s32.totalorder %s10, 0
      %p146 = por %p144, %p145
      %p147 = scmp.ne.s32.totalorder %s136, %s139
      %p148 = scmp.eq.s32.totalorder %s15, 1
      %p149 = por %p147, %p148
      %p150 = scmp.ne.s32.totalorder %s139, %s140
      %p151 = scmp.eq.s32.totalorder %s15, 0
      %p152 = por %p150, %p151
      %p153 = scmp.ne.s32.totalorder %s139, %s140
      %p154 = scmp.eq.s32.totalorder %s16, 1
      %p155 = por %p153, %p154
      %p157 = scmp.ne.s32.totalorder %s140, %s156
      %p158 = scmp.eq.s32.totalorder %s16, 0
      %p159 = por %p157, %p158
      %p160 = scmp.le.s32.totalorder 1, %s10
      %p161 = scmp.lt.s32.totalorder %s10, 3
      %p162 = pnand %p160, %p161
      %p163 = pneg %p162
      // Predicated region
      $region9: #{arcface_loss.3} parent=5 // pred_check
        _
      $region10: #{arcface_loss.3} parent=5 // pred_check_branch
        %165 = sbr.rel (%p162) target = $region12
      $region11: #{arcface_loss.3} parent=5 // pred_region
        %s166 = ssub.s32 %s10, 1
        // Predicated region
        $region13: #{arcface_loss.3} parent=11 // pred_check
          %p167 = pneg %p48
        $region14: #{arcface_loss.3} parent=11 // pred_check_branch
          %169 = sbr.rel (%p167) target = $region16
        $region15: #{arcface_loss.3} parent=11 // pred_region
          %s170 = smul.u32 2, %s19
          %p171 = scmp.lt.s32.totalorder %s170, 1
          %s172 = scalar_select %p171, %s170, 1
          %s173 = smul.addr %s172, 4
          %s174 = scalar_lea.vmem %s0, %s173
          %s175 = smul.u32 2, %s19
        $region16: #{arcface_loss.3} parent=11 // pred_fallthru
          _
        // Predicated region
        $region17: #{arcface_loss.3} parent=11 // pred_check
          %p176 = pneg %p100
        $region18: #{arcface_loss.3} parent=11 // pred_check_branch
          %178 = sbr.rel (%p176) target = $region20
        $region19: #{arcface_loss.3} parent=11 // pred_region
          %s179 = smul.u32 2, %s19
          %p180 = scmp.lt.s32.totalorder %s179, 1
          %s181 = scalar_select %p180, %s179, 1
          %s182 = smul.addr %s181, 8
          %s183 = scalar_lea.vmem %s2, %s182
          %s184 = smul.u32 2, %s19
        $region20: #{arcface_loss.3} parent=11 // pred_fallthru
          _
      $region12: #{arcface_loss.3} parent=5 // pred_fallthru
        _
      %p185 = scmp.lt.s32.totalorder %s10, 2
      // Predicated region
      $region21: #{arcface_loss.3} parent=5 // pred_check
        %p186 = pneg %p185
      $region22: #{arcface_loss.3} parent=5 // pred_check_branch
        %188 = sbr.rel (%p186) target = $region24
      $region23: #{arcface_loss.3} parent=5 // pred_region
        // Predicated region
        $region25: #{arcface_loss.3} parent=23 // pred_check
          %p189 = pneg %p68
        $region26: #{arcface_loss.3} parent=23 // pred_check_branch
          %191 = sbr.rel (%p189) target = $region28
        $region27: #{arcface_loss.3} parent=23 // pred_region
          %s192 = sand.u32 %s58, 1
          %s193 = sand.u32 %s58, 1
          %s194 = smul.addr %s193, 256
          %s195 = scalar_lea.vmem [#allocation5], %s194
          %s196 = smul.u32 4, %s18
          %s197 = smul.addr %s196, 4
          %s198 = scalar_lea.vmem %s1, %s197
          // Predicated region
          $region29: #{arcface_loss.3} parent=27 // pred_check
            _
          $region30: #{arcface_loss.3} parent=27 // pred_check_branch
            %200 = sbr.rel (0) target = $region32
          $region31: #{arcface_loss.3} parent=27 // pred_region
            // Predicated region
            $region33: #{arcface_loss.3} parent=31 // pred_check
              _
            $region34: #{arcface_loss.3} parent=31 // pred_check_branch
              %202 = sbr.rel (0) target = $region36
            $region35: #{arcface_loss.3} parent=31 // pred_region
              loop: start=0, step=1, limit=1
              $region37: #{arcface_loss.3} parent=35 // loop_pre_header
                _
              $region38: #{arcface_loss.3} parent=35 // loop_header
                %s204 = sphi 0, %s208
                %p205 = scmp.ge.s32.totalorder %s204, 1
                %s209 = sphi %s198, %s198
                %s210 = sphi %s195, %s195
              $region39: #{arcface_loss.3} parent=35 // loop_header_branch
                %207 = sbr.rel (%p205) target = $region43
              $region40: #{arcface_loss.3} parent=35 // loop_body
                %v211 = vld [vmem:[%s209] sm:$0xff]
                %212 = vst [vmem:[%s210] sm:$0xff] %v211
                %v213 = vld [vmem:[%s209 + $0x8] sm:$0xff]
                %214 = vst [vmem:[%s210 + $0x8] sm:$0xff] %v213
                %v215 = vld [vmem:[%s209 + $0x20] sm:$0xff]
                %216 = vst [vmem:[%s210 + $0x10] sm:$0xff] %v215
                %v217 = vld [vmem:[%s209 + $0x28] sm:$0xff]
                %218 = vst [vmem:[%s210 + $0x18] sm:$0xff] %v217
                %v219 = vld [vmem:[%s209 + $0x40] sm:$0xff]
                %220 = vst [vmem:[%s210 + $0x20] sm:$0xff] %v219
                %v221 = vld [vmem:[%s209 + $0x48] sm:$0xff]
                %222 = vst [vmem:[%s210 + $0x28] sm:$0xff] %v221
                %v223 = vld [vmem:[%s209 + $0x60] sm:$0xff]
                %224 = vst [vmem:[%s210 + $0x30] sm:$0xff] %v223
                %v225 = vld [vmem:[%s209 + $0x68] sm:$0xff]
                %226 = vst [vmem:[%s210 + $0x38] sm:$0xff] %v225
                %v227 = vld [vmem:[%s209 + $0x80] sm:$0xff]
                %228 = vst [vmem:[%s210 + $0x40] sm:$0xff] %v227
                %v229 = vld [vmem:[%s209 + $0x88] sm:$0xff]
                %230 = vst [vmem:[%s210 + $0x48] sm:$0xff] %v229
                %v231 = vld [vmem:[%s209 + $0xa0] sm:$0xff]
                %232 = vst [vmem:[%s210 + $0x50] sm:$0xff] %v231
                %v233 = vld [vmem:[%s209 + $0xa8] sm:$0xff]
                %234 = vst [vmem:[%s210 + $0x58] sm:$0xff] %v233
                %v235 = vld [vmem:[%s209 + $0xc0] sm:$0xff]
                %236 = vst [vmem:[%s210 + $0x60] sm:$0xff] %v235
                %v237 = vld [vmem:[%s209 + $0xc8] sm:$0xff]
                %238 = vst [vmem:[%s210 + $0x68] sm:$0xff] %v237
                %v239 = vld [vmem:[%s209 + $0xe0] sm:$0xff]
                %240 = vst [vmem:[%s210 + $0x70] sm:$0xff] %v239
                %v241 = vld [vmem:[%s209 + $0xe8] sm:$0xff]
                %242 = vst [vmem:[%s210 + $0x78] sm:$0xff] %v241
                %v243 = vld [vmem:[%s209 + $0x100] sm:$0xff]
                %244 = vst [vmem:[%s210 + $0x80] sm:$0xff] %v243
                %v245 = vld [vmem:[%s209 + $0x108] sm:$0xff]
                %246 = vst [vmem:[%s210 + $0x88] sm:$0xff] %v245
                %v247 = vld [vmem:[%s209 + $0x120] sm:$0xff]
                %248 = vst [vmem:[%s210 + $0x90] sm:$0xff] %v247
                %v249 = vld [vmem:[%s209 + $0x128] sm:$0xff]
                %250 = vst [vmem:[%s210 + $0x98] sm:$0xff] %v249
                %v251 = vld [vmem:[%s209 + $0x140] sm:$0xff]
                %252 = vst [vmem:[%s210 + $0xa0] sm:$0xff] %v251
                %v253 = vld [vmem:[%s209 + $0x148] sm:$0xff]
                %254 = vst [vmem:[%s210 + $0xa8] sm:$0xff] %v253
                %v255 = vld [vmem:[%s209 + $0x160] sm:$0xff]
                %256 = vst [vmem:[%s210 + $0xb0] sm:$0xff] %v255
                %v257 = vld [vmem:[%s209 + $0x168] sm:$0xff]
                %258 = vst [vmem:[%s210 + $0xb8] sm:$0xff] %v257
                %v259 = vld [vmem:[%s209 + $0x180] sm:$0xff]
                %260 = vst [vmem:[%s210 + $0xc0] sm:$0xff] %v259
                %v261 = vld [vmem:[%s209 + $0x188] sm:$0xff]
                %262 = vst [vmem:[%s210 + $0xc8] sm:$0xff] %v261
                %v263 = vld [vmem:[%s209 + $0x1a0] sm:$0xff]
                %264 = vst [vmem:[%s210 + $0xd0] sm:$0xff] %v263
                %v265 = vld [vmem:[%s209 + $0x1a8] sm:$0xff]
                %266 = vst [vmem:[%s210 + $0xd8] sm:$0xff] %v265
                %v267 = vld [vmem:[%s209 + $0x1c0] sm:$0xff]
                %268 = vst [vmem:[%s210 + $0xe0] sm:$0xff] %v267
                %v269 = vld [vmem:[%s209 + $0x1c8] sm:$0xff]
                %270 = vst [vmem:[%s210 + $0xe8] sm:$0xff] %v269
                %v271 = vld [vmem:[%s209 + $0x1e0] sm:$0xff]
                %272 = vst [vmem:[%s210 + $0xf0] sm:$0xff] %v271
                %v273 = vld [vmem:[%s209 + $0x1e8] sm:$0xff]
                %274 = vst [vmem:[%s210 + $0xf8] sm:$0xff] %v273
              $region41: #{arcface_loss.3} parent=35 // loop_footer
                %s208 = sadd.s32 1, %s204
              $region42: #{arcface_loss.3} parent=35 // loop_footer_branch
                %203 = sbr.rel target = $region38
              $region43: #{arcface_loss.3} parent=35 // loop_exit
                _
            $region36: #{arcface_loss.3} parent=31 // pred_fallthru
              _
            // Predicated region
            $region44: #{arcface_loss.3} parent=31 // pred_check
              _
            $region45: #{arcface_loss.3} parent=31 // pred_check_branch
              %276 = sbr.rel target = $region47
            $region46: #{arcface_loss.3} parent=31 // pred_region
              _
            $region47: #{arcface_loss.3} parent=31 // pred_fallthru
              _
          $region32: #{arcface_loss.3} parent=27 // pred_fallthru
            _
          %277 = vnop
        $region28: #{arcface_loss.3} parent=23 // pred_fallthru
          _
        // Predicated region
        $region48: #{arcface_loss.3} parent=23 // pred_check
          %p278 = pneg %p120
        $region49: #{arcface_loss.3} parent=23 // pred_check_branch
          %280 = sbr.rel (%p278) target = $region51
        $region50: #{arcface_loss.3} parent=23 // pred_region
          %s281 = smul.u32 4, %s18
          %p282 = scmp.lt.s32.totalorder %s281, 7
          %s283 = scalar_select %p282, %s281, 7
          %s284 = scalar_lea.vmem %s3, %s283
          %s285 = smul.u32 4, %s18
        $region51: #{arcface_loss.3} parent=23 // pred_fallthru
          _
      $region24: #{arcface_loss.3} parent=5 // pred_fallthru
        _
      %p286 = scmp.le.s32.totalorder 1, %s10
      %p287 = scmp.lt.s32.totalorder %s10, 3
      %p288 = pnand %p286, %p287
      %p289 = pneg %p288
      // Predicated region
      $region52: #{arcface_loss.3} parent=5 // pred_check
        _
      $region53: #{arcface_loss.3} parent=5 // pred_check_branch
        %291 = sbr.rel (%p288) target = $region55
      $region54: #{arcface_loss.3} parent=5 // pred_region
        %s292 = ssub.s32 %s10, 1
        %s293 = sand.u32 %s61, 1
        %s294 = sand.u32 %s61, 1
        %s295 = smul.addr %s294, 256
        %s296 = scalar_lea.vmem [#allocation5], %s295
        // Predicated region
        $region56: #{arcface_loss.3} parent=54 // pred_check
          %p297 = pneg %p74
        $region57: #{arcface_loss.3} parent=54 // pred_check_branch
          %299 = sbr.rel (%p297) target = $region59
        $region58: #{arcface_loss.3} parent=54 // pred_region
          _
        $region59: #{arcface_loss.3} parent=54 // pred_fallthru
          _
        %s300 = smul.u32 2, %s19
        %p301 = scmp.lt.s32.totalorder %s300, 1
        %s302 = scalar_select %p301, %s300, 1
        %s303 = smul.addr %s302, 4
        %s304 = scalar_lea.vmem %s0, %s303
        %p305 = pneg %p48
        %p306 = pneg %p45
        %s307 = sand.u32 %s61, 1
        %s308 = sand.u32 %s61, 1
        %s309 = smul.addr %s308, 256
        %s310 = scalar_lea.vmem [#allocation5], %s309
        %p311 = pneg %p74
        %p312 = pneg %p71
        %s313 = smul.u32 2, %s19
        %p314 = scmp.lt.s32.totalorder %s313, 1
        %s315 = scalar_select %p314, %s313, 1
        %s316 = smul.addr %s315, 8
        %s317 = scalar_lea.vmem %s2, %s316
        %p318 = pneg %p100
        %p319 = pneg %p97
        %s320 = smul.u32 4, %s20
        %p321 = scmp.lt.s32.totalorder %s320, 7
        %s322 = scalar_select %p321, %s320, 7
        %s323 = scalar_lea.vmem %s3, %s322
        %p324 = pneg %p126
        %p325 = pneg %p123
        %p326 = pneg %p152
        %p327 = pneg %p149
        %s328 = smul.u32 2, %s19
        %p329 = scmp.lt.s32.totalorder %s328, 1
        %s330 = scalar_select %p329, %s328, 1
        %s331 = smul.addr %s330, 8
        %s332 = scalar_lea.vmem %s4, %s331
        %s333 = smul.u32 2, %s19
        %p334 = scmp.lt.s32.totalorder %s333, 1
        %s335 = scalar_select %p334, %s333, 1
        %s336 = smul.addr %s335, 4
        %s337 = scalar_lea.vmem %s0, %s336
        %s338 = smul.u32 2, %s19
        %s339 = smul.u32 4, %s20
        %s340 = smul.u32 2, %s19
        %p341 = scmp.lt.s32.totalorder %s340, 1
        %s342 = scalar_select %p341, %s340, 1
        %s343 = smul.addr %s342, 8
        %s344 = scalar_lea.vmem %s2, %s343
        %s345 = smul.u32 2, %s19
        %s346 = smul.u32 4, %s20
        %p347 = scmp.lt.s32.totalorder %s346, 7
        %s348 = scalar_select %p347, %s346, 7
        %s349 = scalar_lea.vmem %s3, %s348
        %s350 = smul.u32 4, %s20
        %s351 = smul.u32 2, %s19
        %p352 = scmp.lt.s32.totalorder %s351, 1
        %s353 = scalar_select %p352, %s351, 1
        %s354 = smul.addr %s353, 8
        %s355 = scalar_lea.vmem %s4, %s354
        %s356 = smul.u32 2, %s19
        %p358 = scmp.eq.s32.totalorder %s20, 0
        // Predicated region
        $region60: #{arcface_loss.3} parent=54 // pred_check
          %p359 = pneg %p358
        $region61: #{arcface_loss.3} parent=54 // pred_check_branch
          %361 = sbr.rel (%p359) target = $region63
        $region62: #{arcface_loss.3} parent=54 // pred_region
          %vm362 = vcmask 7168
          %363 = vst.msk [vmem:[#allocation2] sm:$0xff] %vm362, -inf
          %364 = vst.msk [vmem:[#allocation2 + $0x8] sm:$0xff] %vm362, -inf
          %365 = vst.msk [vmem:[#allocation3] sm:$0xff] %vm362, 0.0
          %366 = vst.msk [vmem:[#allocation3 + $0x8] sm:$0xff] %vm362, 0.0
          %367 = vst.msk [vmem:[#allocation4] sm:$0xff] %vm362, 0.0
          %368 = vst.msk [vmem:[#allocation4 + $0x8] sm:$0xff] %vm362, 0.0
        $region63: #{arcface_loss.3} parent=54 // pred_fallthru
          _
        %v369 = vld [vmem:[%s337] sm:$0xf]
        %v370 = vld [vmem:[%s337 + $0x4] sm:$0xf]
        %v371 = vld [vmem:[%s296] sm:$0xff]
        %v372 = vld [vmem:[%s296 + $0x8] sm:$0xff]
        %v373 = vld [vmem:[%s296 + $0x10] sm:$0xff]
        %v374 = vld [vmem:[%s296 + $0x18] sm:$0xff]
        %v375 = vld [vmem:[%s296 + $0x20] sm:$0xff]
        %v376 = vld [vmem:[%s296 + $0x28] sm:$0xff]
        %v377 = vld [vmem:[%s296 + $0x30] sm:$0xff]
        %v378 = vld [vmem:[%s296 + $0x38] sm:$0xff]
        %v379 = vld [vmem:[%s296 + $0x40] sm:$0xff]
        %v380 = vld [vmem:[%s296 + $0x48] sm:$0xff]
        %v381 = vld [vmem:[%s296 + $0x50] sm:$0xff]
        %v382 = vld [vmem:[%s296 + $0x58] sm:$0xff]
        %v383 = vld [vmem:[%s296 + $0x60] sm:$0xff]
        %v384 = vld [vmem:[%s296 + $0x68] sm:$0xff]
        %v385 = vld [vmem:[%s296 + $0x70] sm:$0xff]
        %v386 = vld [vmem:[%s296 + $0x78] sm:$0xff]
        %v387 = vld [vmem:[%s296 + $0x80] sm:$0xff]
        %v388 = vld [vmem:[%s296 + $0x88] sm:$0xff]
        %v389 = vld [vmem:[%s296 + $0x90] sm:$0xff]
        %v390 = vld [vmem:[%s296 + $0x98] sm:$0xff]
        %v391 = vld [vmem:[%s296 + $0xa0] sm:$0xff]
        %v392 = vld [vmem:[%s296 + $0xa8] sm:$0xff]
        %v393 = vld [vmem:[%s296 + $0xb0] sm:$0xff]
        %v394 = vld [vmem:[%s296 + $0xb8] sm:$0xff]
        %v395 = vld [vmem:[%s296 + $0xc0] sm:$0xff]
        %v396 = vld [vmem:[%s296 + $0xc8] sm:$0xff]
        %v397 = vld [vmem:[%s296 + $0xd0] sm:$0xff]
        %v398 = vld [vmem:[%s296 + $0xd8] sm:$0xff]
        %v399 = vld [vmem:[%s296 + $0xe0] sm:$0xff]
        %v400 = vld [vmem:[%s296 + $0xe8] sm:$0xff]
        %v401 = vld [vmem:[%s296 + $0xf0] sm:$0xff]
        %v402 = vld [vmem:[%s296 + $0xf8] sm:$0xff]
        %v405 = vunpack.c.l.b16 %v369
        %v406 = vunpack.c.l.b16 %v370
        %v407 = vpack.c.b16 %v406, %v405
        %v441 = vunpack.c.l.b16 %v371
        %v442 = vunpack.c.h.b16 %v371
        %v443 = vunpack.c.l.b16 %v372
        %v444 = vunpack.c.h.b16 %v372
        %v445 = vunpack.c.l.b16 %v373
        %v446 = vunpack.c.h.b16 %v373
        %v447 = vunpack.c.l.b16 %v374
        %v448 = vunpack.c.h.b16 %v374
        %v449 = vunpack.c.l.b16 %v375
        %v450 = vunpack.c.h.b16 %v375
        %v451 = vunpack.c.l.b16 %v376
        %v452 = vunpack.c.h.b16 %v376
        %v453 = vunpack.c.l.b16 %v377
        %v454 = vunpack.c.h.b16 %v377
        %v455 = vunpack.c.l.b16 %v378
        %v456 = vunpack.c.h.b16 %v378
        %v457 = vunpack.c.l.b16 %v379
        %v458 = vunpack.c.h.b16 %v379
        %v459 = vunpack.c.l.b16 %v380
        %v460 = vunpack.c.h.b16 %v380
        %v461 = vunpack.c.l.b16 %v381
        %v462 = vunpack.c.h.b16 %v381
        %v463 = vunpack.c.l.b16 %v382
        %v464 = vunpack.c.h.b16 %v382
        %v465 = vunpack.c.l.b16 %v383
        %v466 = vunpack.c.h.b16 %v383
        %v467 = vunpack.c.l.b16 %v384
        %v468 = vunpack.c.h.b16 %v384
        %v469 = vunpack.c.l.b16 %v385
        %v470 = vunpack.c.h.b16 %v385
        %v471 = vunpack.c.l.b16 %v386
        %v472 = vunpack.c.h.b16 %v386
        %v473 = vunpack.c.l.b16 %v387
        %v474 = vunpack.c.h.b16 %v387
        %v475 = vunpack.c.l.b16 %v388
        %v476 = vunpack.c.h.b16 %v388
        %v477 = vunpack.c.l.b16 %v389
        %v478 = vunpack.c.h.b16 %v389
        %v479 = vunpack.c.l.b16 %v390
        %v480 = vunpack.c.h.b16 %v390
        %v481 = vunpack.c.l.b16 %v391
        %v482 = vunpack.c.h.b16 %v391
        %v483 = vunpack.c.l.b16 %v392
        %v484 = vunpack.c.h.b16 %v392
        %v485 = vunpack.c.l.b16 %v393
        %v486 = vunpack.c.h.b16 %v393
        %v487 = vunpack.c.l.b16 %v394
        %v488 = vunpack.c.h.b16 %v394
        %v489 = vunpack.c.l.b16 %v395
        %v490 = vunpack.c.h.b16 %v395
        %v491 = vunpack.c.l.b16 %v396
        %v492 = vunpack.c.h.b16 %v396
        %v493 = vunpack.c.l.b16 %v397
        %v494 = vunpack.c.h.b16 %v397
        %v495 = vunpack.c.l.b16 %v398
        %v496 = vunpack.c.h.b16 %v398
        %v497 = vunpack.c.l.b16 %v399
        %v498 = vunpack.c.h.b16 %v399
        %v499 = vunpack.c.l.b16 %v400
        %v500 = vunpack.c.h.b16 %v400
        %v501 = vunpack.c.l.b16 %v401
        %v502 = vunpack.c.h.b16 %v401
        %v503 = vunpack.c.l.b16 %v402
        %v504 = vunpack.c.h.b16 %v402
        %v505 = vpack.c.b16 %v445, %v441
        %v506 = vpack.c.b16 %v446, %v442
        %v507 = vpack.c.b16 %v447, %v443
        %v508 = vpack.c.b16 %v448, %v444
        %v509 = vpack.c.b16 %v453, %v449
        %v510 = vpack.c.b16 %v454, %v450
        %v511 = vpack.c.b16 %v455, %v451
        %v512 = vpack.c.b16 %v456, %v452
        %v513 = vpack.c.b16 %v461, %v457
        %v514 = vpack.c.b16 %v462, %v458
        %v515 = vpack.c.b16 %v463, %v459
        %v516 = vpack.c.b16 %v464, %v460
        %v517 = vpack.c.b16 %v469, %v465
        %v518 = vpack.c.b16 %v470, %v466
        %v519 = vpack.c.b16 %v471, %v467
        %v520 = vpack.c.b16 %v472, %v468
        %v521 = vpack.c.b16 %v477, %v473
        %v522 = vpack.c.b16 %v478, %v474
        %v523 = vpack.c.b16 %v479, %v475
        %v524 = vpack.c.b16 %v480, %v476
        %v525 = vpack.c.b16 %v485, %v481
        %v526 = vpack.c.b16 %v486, %v482
        %v527 = vpack.c.b16 %v487, %v483
        %v528 = vpack.c.b16 %v488, %v484
        %v529 = vpack.c.b16 %v493, %v489
        %v530 = vpack.c.b16 %v494, %v490
        %v531 = vpack.c.b16 %v495, %v491
        %v532 = vpack.c.b16 %v496, %v492
        %v533 = vpack.c.b16 %v501, %v497
        %v534 = vpack.c.b16 %v502, %v498
        %v535 = vpack.c.b16 %v503, %v499
        %v536 = vpack.c.b16 %v504, %v500
        %569 = vmatprep.subr.bf16.mxu0 %v506
        %570 = vmatpush1.bf16.msra.mxu0 %v505
        %571 = vmatprep.subr.bf16.mxu0 %v510
        %572 = vmatpush1.bf16.msra.mxu0 %v509
        %573 = vmatprep.subr.bf16.mxu0 %v514
        %574 = vmatpush1.bf16.msra.mxu0 %v513
        %575 = vmatprep.subr.bf16.mxu0 %v518
        %576 = vmatpush1.bf16.msra.mxu0 %v517
        %577 = vmatprep.subr.bf16.mxu0 %v522
        %578 = vmatpush1.bf16.msra.mxu0 %v521
        %579 = vmatprep.subr.bf16.mxu0 %v526
        %580 = vmatpush1.bf16.msra.mxu0 %v525
        %581 = vmatprep.subr.bf16.mxu0 %v530
        %582 = vmatpush1.bf16.msra.mxu0 %v529
        %583 = vmatprep.subr.bf16.mxu0 %v534
        %584 = vmatpush1.bf16.msra.mxu0 %v533
        %585 = vmatprep.subr.bf16.mxu0 0
        %586 = vmatpush1.bf16.msra.mxu0 0
        %587 = vmatprep.subr.bf16.mxu0 0
        %588 = vmatpush1.bf16.msra.mxu0 0
        %589 = vmatprep.subr.bf16.mxu0 0
        %590 = vmatpush1.bf16.msra.mxu0 0
        %591 = vmatprep.subr.bf16.mxu0 0
        %592 = vmatpush1.bf16.msra.mxu0 0
        %593 = vmatprep.subr.bf16.mxu0 0
        %594 = vmatpush1.bf16.msra.mxu0 0
        %595 = vmatprep.subr.bf16.mxu0 0
        %596 = vmatpush1.bf16.msra.mxu0 0
        %597 = vmatprep.subr.bf16.mxu0 0
        %598 = vmatpush1.bf16.msra.mxu0 0
        %599 = vmatprep.subr.bf16.mxu0 0
        %600 = vmatpush1.bf16.msra.mxu0 0
        %601 = vmatprep.mubr.bf16.mxu0 0
        %602 = vmatmul.mubr.bf16.gmra.mrb[0].mxu0 %v407
        %v603 = vpop.f32.mrb[0].mxu0
        %v604 = vadd.f32 0.0, %v603
        %v605 = vpop.f32.mrb[0].mxu0
        %v606 = vadd.f32 0.0, %v605
        %v607 = vpop.f32.mrb[0].mxu0
        %v608 = vadd.f32 0.0, %v607
        %v609 = vpop.f32.mrb[0].mxu0
        %v610 = vadd.f32 0.0, %v609
        %611 = vdwg.mxu0
        %612 = vmatprep.subr.bf16.mxu0 %v508
        %613 = vmatpush1.bf16.msra.mxu0 %v507
        %614 = vmatprep.subr.bf16.mxu0 %v512
        %615 = vmatpush1.bf16.msra.mxu0 %v511
        %616 = vmatprep.subr.bf16.mxu0 %v516
        %617 = vmatpush1.bf16.msra.mxu0 %v515
        %618 = vmatprep.subr.bf16.mxu0 %v520
        %619 = vmatpush1.bf16.msra.mxu0 %v519
        %620 = vmatprep.subr.bf16.mxu0 %v524
        %621 = vmatpush1.bf16.msra.mxu0 %v523
        %622 = vmatprep.subr.bf16.mxu0 %v528
        %623 = vmatpush1.bf16.msra.mxu0 %v527
        %624 = vmatprep.subr.bf16.mxu0 %v532
        %625 = vmatpush1.bf16.msra.mxu0 %v531
        %626 = vmatprep.subr.bf16.mxu0 %v536
        %627 = vmatpush1.bf16.msra.mxu0 %v535
        %628 = vmatprep.subr.bf16.mxu0 0
        %629 = vmatpush1.bf16.msra.mxu0 0
        %630 = vmatprep.subr.bf16.mxu0 0
        %631 = vmatpush1.bf16.msra.mxu0 0
        %632 = vmatprep.subr.bf16.mxu0 0
        %633 = vmatpush1.bf16.msra.mxu0 0
        %634 = vmatprep.subr.bf16.mxu0 0
        %635 = vmatpush1.bf16.msra.mxu0 0
        %636 = vmatprep.subr.bf16.mxu0 0
        %637 = vmatpush1.bf16.msra.mxu0 0
        %638 = vmatprep.subr.bf16.mxu0 0
        %639 = vmatpush1.bf16.msra.mxu0 0
        %640 = vmatprep.subr.bf16.mxu0 0
        %641 = vmatpush1.bf16.msra.mxu0 0
        %642 = vmatprep.subr.bf16.mxu0 0
        %643 = vmatpush1.bf16.msra.mxu0 0
        %644 = vmatprep.mubr.bf16.mxu0 0
        %645 = vmatmul.mubr.bf16.gmra.mrb[0].mxu0 %v407
        %v646 = vpop.f32.mrb[0].mxu0
        %v647 = vadd.f32 0.0, %v646
        %v648 = vpop.f32.mrb[0].mxu0
        %v649 = vadd.f32 0.0, %v648
        %v650 = vpop.f32.mrb[0].mxu0
        %v651 = vadd.f32 0.0, %v650
        %v652 = vpop.f32.mrb[0].mxu0
        %v653 = vadd.f32 0.0, %v652
        %654 = vdwg.mxu0
        %v655 = vld [vmem:[%s344] sm:$0xff]
        %v656 = vld [vmem:[%s344 + $0x8] sm:$0xff]
        %s657 = smul.u32 %s20, 512
        %v658 = vstv %s657
        %v659 = vsub.s32 %v655, %v658
        %v660 = vsub.s32 %v656, %v658
        %v661 = vlaneseq
        %v662 = vand.u32 %v661, 127
        %v663 = vadd.s32 %v662, 128
        %v664 = vadd.s32 %v662, 256
        %v665 = vadd.s32 %v662, 384
        %666 = vset.pattern.permute.xlu0 0
        %667 = vperm.xlu0 %666, %v659
        %v668 = vpop.permute.xlu0 %667
        %669 = vset.pattern.permute.xlu0 0
        %670 = vperm.xlu0 %669, %v660
        %v671 = vpop.permute.xlu0 %670
        %vm672 = vcmp.eq.s32.totalorder %v662, %v668
        %vm673 = vcmp.eq.s32.totalorder %v663, %v668
        %vm674 = vcmp.eq.s32.totalorder %v664, %v668
        %vm675 = vcmp.eq.s32.totalorder %v665, %v668
        %vm676 = vcmp.eq.s32.totalorder %v662, %v671
        %vm677 = vcmp.eq.s32.totalorder %v663, %v671
        %vm678 = vcmp.eq.s32.totalorder %v664, %v671
        %vm679 = vcmp.eq.s32.totalorder %v665, %v671
        %v680 = vsel %vm672, %v604, 0.0
        %v681 = vsel %vm673, %v606, 0.0
        %v682 = vsel %vm674, %v647, 0.0
        %v683 = vsel %vm675, %v649, 0.0
        %v684 = vsel %vm676, %v608, 0.0
        %v685 = vsel %vm677, %v610, 0.0
        %v686 = vsel %vm678, %v651, 0.0
        %v687 = vsel %vm679, %v653, 0.0
        %v688 = vadd.f32 %v680, %v681
        %v689 = vadd.f32 %v688, %v682
        %v690 = vadd.f32 %v689, %v683
        %691 = vadd.xlane.f32.xlu0 %v690
        %v692 = vpop.xlane.xlu0 %691
        %v693 = vadd.f32 %v684, %v685
        %v694 = vadd.f32 %v693, %v686
        %v695 = vadd.f32 %v694, %v687
        %696 = vadd.xlane.f32.xlu0 %v695
        %v697 = vpop.xlane.xlu0 %696
        %v698 = vmul.f32 %v692, 0.015625
        %v699 = vmul.f32 %v697, 0.015625
        %v700 = vmax.f32 %v698, -0.9999999
        %v701 = vmax.f32 %v699, -0.9999999
        %v702 = vmin.f32 %v700, 0.9999999
        %v703 = vmin.f32 %v701, 0.9999999
        %v704 = vmul.f32 %v702, %v702
        %v705 = vmul.f32 %v703, %v703
        %v706 = vsub.f32 1.0, %v704
        %v707 = vsub.f32 1.0, %v705
        %v708 = vmax.f32 %v706, 0.0
        %v709 = vmax.f32 %v707, 0.0
        %v710 = vrsqrt.pop %v708
        %v711 = vmul.f32 %v708, %v710
        %vm712 = vcmp.eq.f32.partialorder %v708, inf
        %v713 = vsel %vm712, %v708, %v711
        %vm714 = vcmp.eq.f32.partialorder %v708, 0.0
        %v715 = vand.u32 %v708, 2147483648
        %v716 = vsel %vm714, %v715, %v713
        %v717 = vrsqrt.pop %v709
        %v718 = vmul.f32 %v709, %v717
        %vm719 = vcmp.eq.f32.partialorder %v709, inf
        %v720 = vsel %vm719, %v709, %v718
        %vm721 = vcmp.eq.f32.partialorder %v709, 0.0
        %v722 = vand.u32 %v709, 2147483648
        %v723 = vsel %vm721, %v722, %v720
        %v724 = vmul.f32 %v702, 0.87758255
        %v725 = vmul.f32 %v703, 0.87758255
        %v726 = vmul.f32 %v716, 0.47942555
        %v727 = vmul.f32 %v723, 0.47942555
        %v728 = vsub.f32 %v724, %v726
        %v729 = vsub.f32 %v725, %v727
        %v730 = vmul.f32 %v728, 64.0
        %v731 = vmul.f32 %v729, 64.0
        %v732 = vld [vmem:[%s349] sm:$0xf]
        %v734 = vlaneseq
        %v735 = vshrl.u32 %v734, 7
        %v736 = vsub.s32 0, %v735
        %v737 = vrot.slane %v732, %v736
        %v738 = vlaneseq
        %v739 = vshrl.u32 %v738, 7
        %v740 = vsub.s32 1, %v739
        %v741 = vrot.slane %v732, %v740
        %v742 = vlaneseq
        %v743 = vshrl.u32 %v742, 7
        %v744 = vsub.s32 2, %v743
        %v745 = vrot.slane %v732, %v744
        %v746 = vlaneseq
        %v747 = vshrl.u32 %v746, 7
        %v748 = vsub.s32 3, %v747
        %v749 = vrot.slane %v732, %v748
        %v754 = vadd.f32 %v604, %v737
        %v755 = vadd.f32 %v606, %v741
        %v756 = vadd.f32 %v647, %v745
        %v757 = vadd.f32 %v649, %v749
        %v758 = vadd.f32 %v608, %v737
        %v759 = vadd.f32 %v610, %v741
        %v760 = vadd.f32 %v651, %v745
        %v761 = vadd.f32 %v653, %v749
        %v762 = vsel %vm672, %v730, %v754
        %v763 = vsel %vm673, %v730, %v755
        %v764 = vsel %vm674, %v730, %v756
        %v765 = vsel %vm675, %v730, %v757
        %v766 = vsel %vm676, %v731, %v758
        %v767 = vsel %vm677, %v731, %v759
        %v768 = vsel %vm678, %v731, %v760
        %v769 = vsel %vm679, %v731, %v761
        %vm770 = vcmp.ge.s32.totalorder %v659, 0
        %vm771 = vcmp.ge.s32.totalorder %v660, 0
        %vm772 = vcmp.lt.s32.totalorder %v659, 512
        %vm773 = vcmp.lt.s32.totalorder %v660, 512
        %vm774 = vmand %vm770, %vm772
        %vm775 = vmand %vm771, %vm773
        %v776 = vld [vmem:[#allocation4] sm:$0xff]
        %v777 = vld [vmem:[#allocation4 + $0x8] sm:$0xff]
        %v778 = vsel %vm774, %v730, 0.0
        %v779 = vsel %vm775, %v731, 0.0
        %v780 = vadd.f32 %v776, %v778
        %v781 = vadd.f32 %v777, %v779
        %vm782 = vcmask 7168
        %783 = vst.msk [vmem:[#allocation4] sm:$0xff] %vm782, %v780
        %784 = vst.msk [vmem:[#allocation4 + $0x8] sm:$0xff] %vm782, %v781
        %v785 = vmax.f32 %v762, %v764
        %v786 = vmax.f32 %v763, %v765
        %v787 = vmax.f32 %v785, %v786
        %788 = vmax.xlane.f32.xlu0 %v787
        %v789 = vpop.xlane.xlu0 %788
        %v790 = vmax.f32 %v766, %v768
        %v791 = vmax.f32 %v767, %v769
        %v792 = vmax.f32 %v790, %v791
        %793 = vmax.xlane.f32.xlu0 %v792
        %v794 = vpop.xlane.xlu0 %793
        %v795 = vld [vmem:[#allocation2] sm:$0xff]
        %v796 = vld [vmem:[#allocation2 + $0x8] sm:$0xff]
        %v797 = vmax.f32 %v795, %v789
        %v798 = vmax.f32 %v796, %v794
        %v799 = vsub.f32 %v795, %v797
        %v800 = vsub.f32 %v796, %v798
        %v801 = vmul.f32 %v799, 1.442695
        %v802 = vpow.pop %v801
        %v803 = vmul.f32 %v800, 1.442695
        %v804 = vpow.pop %v803
        %806 = vset.pattern.permute.xlu0 0
        %807 = vperm.xlu0 %806, %v797
        %v808 = vpop.permute.xlu0 %807
        %811 = vset.pattern.permute.xlu0 0
        %812 = vperm.xlu0 %811, %v798
        %v813 = vpop.permute.xlu0 %812
        %v815 = vsub.f32 %v762, %v808
        %v816 = vsub.f32 %v763, %v808
        %v817 = vsub.f32 %v764, %v808
        %v818 = vsub.f32 %v765, %v808
        %v819 = vsub.f32 %v766, %v813
        %v820 = vsub.f32 %v767, %v813
        %v821 = vsub.f32 %v768, %v813
        %v822 = vsub.f32 %v769, %v813
        %v823 = vmul.f32 %v815, 1.442695
        %v824 = vpow.pop %v823
        %v825 = vmul.f32 %v816, 1.442695
        %v826 = vpow.pop %v825
        %v827 = vmul.f32 %v817, 1.442695
        %v828 = vpow.pop %v827
        %v829 = vmul.f32 %v818, 1.442695
        %v830 = vpow.pop %v829
        %v831 = vmul.f32 %v819, 1.442695
        %v832 = vpow.pop %v831
        %v833 = vmul.f32 %v820, 1.442695
        %v834 = vpow.pop %v833
        %v835 = vmul.f32 %v821, 1.442695
        %v836 = vpow.pop %v835
        %v837 = vmul.f32 %v822, 1.442695
        %v838 = vpow.pop %v837
        %v839 = vld [vmem:[#allocation3] sm:$0xff]
        %v840 = vld [vmem:[#allocation3 + $0x8] sm:$0xff]
        %v841 = vmul.f32 %v802, %v839
        %v842 = vmul.f32 %v804, %v840
        %v843 = vadd.f32 %v824, %v826
        %v844 = vadd.f32 %v843, %v828
        %v845 = vadd.f32 %v844, %v830
        %846 = vadd.xlane.f32.xlu0 %v845
        %v847 = vpop.xlane.xlu0 %846
        %v848 = vadd.f32 %v832, %v834
        %v849 = vadd.f32 %v848, %v836
        %v850 = vadd.f32 %v849, %v838
        %851 = vadd.xlane.f32.xlu0 %v850
        %v852 = vpop.xlane.xlu0 %851
        %v853 = vadd.f32 %v841, %v847
        %v854 = vadd.f32 %v842, %v852
        %855 = vst.msk [vmem:[#allocation3] sm:$0xff] %vm782, %v853
        %856 = vst.msk [vmem:[#allocation3 + $0x8] sm:$0xff] %vm782, %v854
        %857 = vst.msk [vmem:[#allocation2] sm:$0xff] %vm782, %v797
        %858 = vst.msk [vmem:[#allocation2 + $0x8] sm:$0xff] %vm782, %v798
        %p859 = scmp.eq.s32.totalorder %s20, 1
        // Predicated region
        $region64: #{arcface_loss.3} parent=54 // pred_check
          %p860 = pneg %p859
        $region65: #{arcface_loss.3} parent=54 // pred_check_branch
          %862 = sbr.rel (%p860) target = $region67
        $region66: #{arcface_loss.3} parent=54 // pred_region
          %v863 = vld [vmem:[#allocation2] sm:$0xff]
          %v864 = vld [vmem:[#allocation2 + $0x8] sm:$0xff]
          %v865 = vld [vmem:[#allocation3] sm:$0xff]
          %v866 = vld [vmem:[#allocation3 + $0x8] sm:$0xff]
          %v867 = vlog2.pop %v865
          %v868 = vmul.f32 %v867, 0.6931472
          %v869 = vlog2.pop %v866
          %v870 = vmul.f32 %v869, 0.6931472
          %v871 = vadd.f32 %v863, %v868
          %v872 = vadd.f32 %v864, %v870
          %v873 = vld [vmem:[#allocation4] sm:$0xff]
          %v874 = vld [vmem:[#allocation4 + $0x8] sm:$0xff]
          %v875 = vsub.f32 %v871, %v873
          %v876 = vsub.f32 %v872, %v874
          %877 = vst.msk [vmem:[%s355] sm:$0xff] %vm782, %v875
          %878 = vst.msk [vmem:[%s355 + $0x8] sm:$0xff] %vm782, %v876
        $region67: #{arcface_loss.3} parent=54 // pred_fallthru
          _
        %s879 = smul.u32 2, %s19
        %p880 = scmp.lt.s32.totalorder %s879, 1
        %s881 = scalar_select %p880, %s879, 1
        %s882 = smul.addr %s881, 8
        %s883 = scalar_lea.vmem %s4, %s882
        // Predicated region
        $region68: #{arcface_loss.3} parent=54 // pred_check
          %p884 = pneg %p149
        $region69: #{arcface_loss.3} parent=54 // pred_check_branch
          %886 = sbr.rel (%p884) target = $region71
        $region70: #{arcface_loss.3} parent=54 // pred_region
          %s887 = smul.u32 2, %s19
        $region71: #{arcface_loss.3} parent=54 // pred_fallthru
          _
        // Predicated region
        $region72: #{arcface_loss.3} parent=54 // pred_check
          %p888 = pneg %p149
        $region73: #{arcface_loss.3} parent=54 // pred_check_branch
          %890 = sbr.rel (%p888) target = $region75
        $region74: #{arcface_loss.3} parent=54 // pred_region
          %s891 = smul.u32 2, %s19
          %p892 = scmp.lt.s32.totalorder %s891, 1
          %s893 = scalar_select %p892, %s891, 1
          %s894 = smul.addr %s893, 8
          %s895 = scalar_lea.vmem %s4, %s894
        $region75: #{arcface_loss.3} parent=54 // pred_fallthru
          _
      $region55: #{arcface_loss.3} parent=5 // pred_fallthru
        _
      %p896 = scmp.le.s32.totalorder 2, %s10
      // Predicated region
      $region76: #{arcface_loss.3} parent=5 // pred_check
        %p897 = pneg %p896
      $region77: #{arcface_loss.3} parent=5 // pred_check_branch
        %899 = sbr.rel (%p897) target = $region79
      $region78: #{arcface_loss.3} parent=5 // pred_region
        %s900 = ssub.s32 %s10, 2
      $region79: #{arcface_loss.3} parent=5 // pred_fallthru
        _
    $region6: #{arcface_loss.3} parent=1 // loop_footer
      %s14 = sadd.s32 1, %s10
    $region7: #{arcface_loss.3} parent=1 // loop_footer_branch
      %9 = sbr.rel target = $region3
    $region8: #{arcface_loss.3} parent=1 // loop_exit
      _

</llo_original>
